<compile_context>
chip_gen: v6e
topology: v6e:2x2x1
jax: 0.10.0
libtpu: 0.0.40
codegen_flags: <defaults>
</compile_context>

<pallas_src>
import functools
import math

import jax
import jax.numpy as jnp
from jax import lax
from jax.experimental import pallas as pl
from jax.experimental.pallas import tpu as pltpu


# ----------------------------------------------------------------------------
# Element-wise helpers
# ----------------------------------------------------------------------------
@functools.lru_cache(maxsize=None)
def _expm1_supported():
    """Probe (once) whether this jax/Mosaic build lowers expm1 inside Pallas."""
    def k(x_ref, o_ref):
        o_ref[...] = jnp.expm1(x_ref[...])
    try:
        out = pl.pallas_call(
            k, out_shape=jax.ShapeDtypeStruct((8, 128), jnp.float32)
        )(jnp.zeros((8, 128), jnp.float32))
        jax.block_until_ready(out)
        return True
    except Exception:  # pragma: no cover - depends on jax / backend version
        return False


def _elu(x, use_expm1):
    # ELU(alpha=1).  expm1 gives exact parity with jax.nn.elu / torch ELU; the
    # clamped exp-1 fallback is within ~1e-7 absolute on the negative branch.
    xm = jnp.minimum(x, 0.0)
    neg = jnp.expm1(xm) if use_expm1 else jnp.exp(xm) - 1.0
    return jnp.where(x > 0.0, x, neg)


# ----------------------------------------------------------------------------
# Fused transition step (shared by the single-step and rollout kernels)
# ----------------------------------------------------------------------------
def _fused_step(z, wa_ref, ba_ref, wb_ref, bb_ref, *, elu_cols, m_cols,
                use_expm1):
    """One Transition_Recurrent step on a (possibly fold-packed) [rows, W] tile.

    z       : [rows, fold*Z]  f32 value
    wa_ref  : [fold*Z, E + M]   block-diag of [w1 | w3] per fold + wm per fold
    ba_ref  : [1, E + M]
    wb_ref  : [E + M, 3*M]      block-diag of w2 / w4 / wn per fold
    bb_ref  : [1, 3*M]
    where E = fold * 2*h2 (ELU columns), M = fold * Z.
    """
    E, M = elu_cols, m_cols

    # ---- stage A: one wide MXU pass for lin1 / lin3 / lin_m -----------------
    a = (jnp.dot(z.astype(wa_ref.dtype), wa_ref[...],
                 preferred_element_type=jnp.float32) + ba_ref[...])
    _mu = a[:, E:E + M]                                   # lin_m(z)
    if E % 128 == 0:
        # 128-aligned slice: ELU (EUP) only runs on the lin1/lin3 lanes.
        u = jnp.concatenate([_elu(a[:, :E], use_expm1), _mu], axis=-1)
    else:  # fallback for odd hidden sizes
        col = lax.broadcasted_iota(jnp.int32, a.shape, 1)
        u = jnp.where(col < E, _elu(a, use_expm1), a)

    # ---- stage B: one wide MXU pass for lin2 / lin4 / lin_n -----------------
    v = (jnp.dot(u.astype(wb_ref.dtype), wb_ref[...],
                 preferred_element_type=jnp.float32) + bb_ref[...])
    g = jax.nn.sigmoid(v[:, 0:M])                         # lin2 path (gate)
    h = _elu(v[:, M:2 * M], use_expm1)                    # lin4 path (proposal)
    n = v[:, 2 * M:3 * M]                                 # lin_n(_mu)

    return (1.0 - g) * n + g * h + _mu


def _step_kernel(z_ref, wa_ref, ba_ref, wb_ref, bb_ref, mu_ref, *,
                 elu_cols, m_cols, use_expm1):
    mu = _fused_step(z_ref[...], wa_ref, ba_ref, wb_ref, bb_ref,
                     elu_cols=elu_cols, m_cols=m_cols, use_expm1=use_expm1)
    mu_ref[...] = mu.astype(mu_ref.dtype)


def _rollout_kernel(z_ref, wa_ref, ba_ref, wb_ref, bb_ref, out_ref, *,
                    elu_cols, m_cols, use_expm1, num_steps):
    """T recurrence steps in one kernel: weights stay VMEM-resident, z state is
    carried across steps (no per-step pallas_call / weight DMA overhead)."""
    def body(t, z):
        mu = _fused_step(z, wa_ref, ba_ref, wb_ref, bb_ref,
                         elu_cols=elu_cols, m_cols=m_cols,
                         use_expm1=use_expm1)
        out_ref[t] = mu.astype(out_ref.dtype)
        return mu

    lax.fori_loop(0, num_steps, body, z_ref[...].astype(jnp.float32))


# ----------------------------------------------------------------------------
# One-time weight packing
# ----------------------------------------------------------------------------
def choose_fold(batch, z_dim, transition_dim):
    """Lane-folding factor: pack `fold` batch rows into one 128-lane row."""
    h2 = 2 * transition_dim
    if z_dim < 128 and 128 % z_dim == 0:
        fold = 128 // z_dim
        if batch % fold == 0 and (fold * 2 * h2) % 128 == 0:
            return fold
    return 1


def pack_params(params, *, fold=1, matmul_dtype=None):
    """Fuse the 6 Linear layers into two matmul weights (block-diag over fold).

    Call ONCE (model-build time): the concat / scatter ops here cost roughly as
    much as the kernel itself if re-run every step.  matmul_dtype=jnp.bfloat16
    halves weight DMA/VMEM and is full-rate on every TPU generation (incl.
    v5e); biases and all gating math stay f32.
    """
    w1, b1 = params["w1"], params["b1"]
    w2, b2 = params["w2"], params["b2"]
    w3, b3 = params["w3"], params["b3"]
    w4, b4 = params["w4"], params["b4"]
    wm, bm = params["wm"], params["bm"]
    wn, bn = params["wn"], params["bn"]

    z_dim = wm.shape[0]
    h2 = w1.shape[1]                       # = 2 * transition_dim
    wdt = matmul_dtype if matmul_dtype is not None else w1.dtype

    E = fold * 2 * h2                      # ELU (lin1|lin3) columns
    M = fold * z_dim                       # lin_m / output columns
    KA, NA, NB = fold * z_dim, E + M, 3 * M

    wa = jnp.zeros((KA, NA), jnp.float32)
    ba = jnp.zeros((1, NA), jnp.float32)
    wb = jnp.zeros((NA, NB), jnp.float32)
    bb = jnp.zeros((1, NB), jnp.float32)
    for j in range(fold):
        zr = slice(j * z_dim, (j + 1) * z_dim)                  # fold-j z rows
        c1 = slice(j * 2 * h2, j * 2 * h2 + h2)                 # lin1 cols
        c3 = slice(j * 2 * h2 + h2, (j + 1) * 2 * h2)           # lin3 cols
        cm = slice(E + j * z_dim, E + (j + 1) * z_dim)          # lin_m cols
        cg = slice(j * z_dim, (j + 1) * z_dim)                  # gate cols
        ch = slice(M + j * z_dim, M + (j + 1) * z_dim)          # proposal cols
        cn = slice(2 * M + j * z_dim, 2 * M + (j + 1) * z_dim)  # lin_n cols

        wa = wa.at[zr, c1].set(w1); ba = ba.at[:, c1].set(b1)
        wa = wa.at[zr, c3].set(w3); ba = ba.at[:, c3].set(b3)
        wa = wa.at[zr, cm].set(wm); ba = ba.at[:, cm].set(bm)

        wb = wb.at[c1, cg].set(w2); bb = bb.at[:, cg].set(b2)
        wb = wb.at[c3, ch].set(w4); bb = bb.at[:, ch].set(b4)
        wb = wb.at[cm, cn].set(wn); bb = bb.at[:, cn].set(bn)

    return dict(wa=wa.astype(wdt), ba=ba, wb=wb.astype(wdt), bb=bb,
                fold=fold, z_dim=z_dim, h2=h2, elu_cols=E, m_cols=M)


# ----------------------------------------------------------------------------
# Wrappers
# ----------------------------------------------------------------------------
def _pick_block_b(batch, fold):
    # Prefer >=4 grid steps (2 per v7x TensorCore so each core double-buffers
    # its z DMA), then >=2; grow tiles up to 2048 rows to amortize the
    # ~0.35 us per-grid-step overhead (per-tile VMEM stays well under limits
    # on every generation).
    for min_steps in (4, 2):
        for cand in (2048, 1024, 512, 256, 128):
            if (batch % cand == 0 and batch // cand >= min_steps
                    and cand % fold == 0 and (cand // fold) % 8 == 0):
                return cand
    return batch                            # small batch: single resident tile


def _in_specs(packed, rows, width):
    const = lambda i: (0, 0)                # weights resident across grid steps
    return [
        pl.BlockSpec((rows, width), lambda i: (i, 0)),
        pl.BlockSpec(packed["wa"].shape, const),
        pl.BlockSpec(packed["ba"].shape, const),
        pl.BlockSpec(packed["wb"].shape, const),
        pl.BlockSpec(packed["bb"].shape, const),
    ]


def transition_recurrent_forward(z_t_1, packed, *, block_b=None):
    """Pallas-backed Transition_Recurrent.forward(t, z_t_1) (stochastic=False).

    `packed` comes from pack_params (call it once, outside the step loop).
    """
    B, Z = z_t_1.shape
    fold = packed["fold"]
    assert Z == packed["z_dim"] and B % fold == 0
    width = fold * Z
    if block_b is None:
        block_b = _pick_block_b(B, fold)
    assert B % block_b == 0 and block_b % fold == 0, (B, block_b, fold)
    rows = block_b // fold

    z_w = z_t_1.reshape(B // fold, width)        # bit-identical, lane-dense
    kernel = functools.partial(_step_kernel, elu_cols=packed["elu_cols"],
                               m_cols=packed["m_cols"],
                               use_expm1=_expm1_supported())
    out = pl.pallas_call(
        kernel,
        out_shape=jax.ShapeDtypeStruct((B // fold, width), z_t_1.dtype),
        grid_spec=pltpu.PrefetchScalarGridSpec(
            num_scalar_prefetch=0,
            grid=(B // block_b,),
            in_specs=_in_specs(packed, rows, width),
            out_specs=pl.BlockSpec((rows, width), lambda i: (i, 0)),
        ),
        compiler_params=pltpu.CompilerParams(
            dimension_semantics=("parallel",)),
    )(z_w, packed["wa"], packed["ba"], packed["wb"], packed["bb"])
    return out.reshape(B, Z)


def transition_recurrent_rollout(z_0, packed, num_steps, *, block_b=None):
    """Run num_steps of z_t = forward(t, z_{t-1}) inside ONE pallas_call.

    Weights stay VMEM-resident for the whole rollout and the z state never
    round-trips to HBM.  Returns all states, shape [num_steps, B, Z].
    """
    # TODO(synk): assumes the surrounding model feeds mu straight back as the
    # next z; if the rollout mixes in per-step external inputs, add them as an
    # extra grid axis / input ref.
    B, Z = z_0.shape
    fold = packed["fold"]
    assert Z == packed["z_dim"] and B % fold == 0
    width = fold * Z
    if block_b is None:
        block_b = _pick_block_b(B, fold)
    assert B % block_b == 0 and block_b % fold == 0, (B, block_b, fold)
    rows = block_b // fold

    z_w = z_0.reshape(B // fold, width)
    kernel = functools.partial(
        _rollout_kernel, elu_cols=packed["elu_cols"], m_cols=packed["m_cols"],
        use_expm1=_expm1_supported(), num_steps=num_steps)
    out = pl.pallas_call(
        kernel,
        out_shape=jax.ShapeDtypeStruct((num_steps, B // fold, width),
                                       z_0.dtype),
        grid_spec=pltpu.PrefetchScalarGridSpec(
            num_scalar_prefetch=0,
            grid=(B // block_b,),
            in_specs=_in_specs(packed, rows, width),
            out_specs=pl.BlockSpec((num_steps, rows, width),
                                   lambda i: (0, i, 0)),
        ),
        compiler_params=pltpu.CompilerParams(
            dimension_semantics=("parallel",)),
    )(z_w, packed["wa"], packed["ba"], packed["wb"], packed["bb"])
    return out.reshape(num_steps, B, Z)


# ----------------------------------------------------------------------------
# Reference init / forward (PyTorch parity)
# ----------------------------------------------------------------------------
def init_params(key, z_dim, transition_dim, dtype=jnp.float32):
    """PyTorch nn.Linear default init (+/- 1/sqrt(fan_in)); lin_n identity."""
    h2 = transition_dim * 2

    def linear(key, fan_in, fan_out):
        kw, kb = jax.random.split(key)
        bound = 1.0 / math.sqrt(fan_in)
        w = jax.random.uniform(kw, (fan_in, fan_out), dtype, -bound, bound)
        b = jax.random.uniform(kb, (1, fan_out), dtype, -bound, bound)
        return w, b

    keys = jax.random.split(key, 6)
    w1, b1 = linear(keys[0], z_dim, h2)      # lin1
    w2, b2 = linear(keys[1], h2, z_dim)      # lin2
    w3, b3 = linear(keys[2], z_dim, h2)      # lin3
    w4, b4 = linear(keys[3], h2, z_dim)      # lin4
    wm, bm = linear(keys[4], z_dim, z_dim)   # lin_m
    wn = jnp.eye(z_dim, dtype=dtype)         # lin_n: identity_init=True
    bn = jnp.zeros((1, z_dim), dtype=dtype)
    # lin_v / act_var only used when stochastic=True (module has stochastic=False)
    return dict(w1=w1, b1=b1, w2=w2, b2=b2, w3=w3, b3=b3, w4=w4, b4=b4,
                wm=wm, bm=bm, wn=wn, bn=bn)


def reference_forward(z, p):
    """Pure-JAX reference of the PyTorch forward (stochastic=False)."""
    _g = jax.nn.elu(z @ p["w1"] + p["b1"])
    g = jax.nn.sigmoid(_g @ p["w2"] + p["b2"])
    _h = jax.nn.elu(z @ p["w3"] + p["b3"])
    h = jax.nn.elu(_h @ p["w4"] + p["b4"])
    _mu = z @ p["wm"] + p["bm"]
    mu = (1.0 - g) * (_mu @ p["wn"] + p["bn"]) + g * h
    return mu + _mu


if __name__ == "__main__":
    # args.latent_dim = 32, args.num_hidden = 32; batch sized so the folded
    # (lane-dense) path and a multi-step pipelined grid are exercised.
    B, Z, H, T = 256, 32, 32, 6

    key = jax.random.PRNGKey(0)
    kp, kz = jax.random.split(key)
    params = init_params(kp, z_dim=Z, transition_dim=H)
    z_t_1 = jax.random.normal(kz, (B, Z), dtype=jnp.float32)

    # Pack the 6 Linear layers ONCE, outside the per-step path.
    fold = choose_fold(B, Z, H)
    packed = pack_params(params, fold=fold)

    # --- single step (== Transition_Recurrent.forward(t, z_t_1)) -------------
    mu = jax.block_until_ready(transition_recurrent_forward(z_t_1, packed))
    mu_ref = reference_forward(z_t_1, params)
    assert mu.shape == (B, Z)
    assert jnp.allclose(mu, mu_ref, atol=1e-5, rtol=1e-5), "single-step mismatch"

    # --- T-step recurrence hoisted into one kernel ----------------------------
    zs = jax.block_until_ready(transition_recurrent_rollout(z_t_1, packed, T))
    z_c, ref_steps = z_t_1, []
    for _ in range(T):
        z_c = reference_forward(z_c, params)
        ref_steps.append(z_c)
    assert zs.shape == (T, B, Z)
    assert jnp.allclose(zs, jnp.stack(ref_steps), atol=1e-4, rtol=1e-4), \
        "rollout mismatch"

    print("KERNEL_OK")
</pallas_src>

<mosaic_0001>
module attributes {stable_mosaic.version = 11 : i64} {
  func.func @_step_kernel(%arg0: i32, %arg1: memref<32x128xf32, #tpu.memory_space<vmem>>, %arg2: memref<128x640xf32, #tpu.memory_space<vmem>>, %arg3: memref<1x640xf32, #tpu.memory_space<vmem>>, %arg4: memref<640x384xf32, #tpu.memory_space<vmem>>, %arg5: memref<1x384xf32, #tpu.memory_space<vmem>>, %arg6: memref<32x128xf32, #tpu.memory_space<vmem>>) attributes {dimension_semantics = [#tpu.dimension_semantics<parallel>], iteration_bounds = array<i64: 2>, scalar_prefetch = 0 : i64, scratch_operands = 0 : i64, tpu.core_type = #tpu.core_type<tc>, window_params = [{transform_indices = @transform_0, window_bounds = array<i64: 32, 128>}, {pipeline_mode = #tpu.pipeline_mode<synchronous>, transform_indices = @transform_1, window_bounds = array<i64: 128, 640>}, {pipeline_mode = #tpu.pipeline_mode<synchronous>, transform_indices = @transform_2, window_bounds = array<i64: 1, 640>}, {pipeline_mode = #tpu.pipeline_mode<synchronous>, transform_indices = @transform_3, window_bounds = array<i64: 640, 384>}, {pipeline_mode = #tpu.pipeline_mode<synchronous>, transform_indices = @transform_4, window_bounds = array<i64: 1, 384>}, {transform_indices = @transform_5, window_bounds = array<i64: 32, 128>}]} {
    %c0 = arith.constant 0 : index
    %c0_0 = arith.constant 0 : index
    %0 = vector.load %arg1[%c0, %c0_0] : memref<32x128xf32, #tpu.memory_space<vmem>>, vector<32x128xf32>
    %c0_1 = arith.constant 0 : index
    %c0_2 = arith.constant 0 : index
    %1 = vector.load %arg2[%c0_1, %c0_2] : memref<128x640xf32, #tpu.memory_space<vmem>>, vector<128x640xf32>
    %cst = arith.constant dense<0.000000e+00> : vector<32x640xf32>
    %2 = tpu.matmul %0, %1, %cst {dimension_numbers = #tpu.dot_dimension_numbers<[1], [0], [0], [1], [0, 0, 1, 1], [], []>} : vector<32x128xf32>, vector<128x640xf32>, vector<32x640xf32> -> vector<32x640xf32>
    %c0_3 = arith.constant 0 : index
    %c0_4 = arith.constant 0 : index
    %3 = vector.load %arg3[%c0_3, %c0_4] : memref<1x640xf32, #tpu.memory_space<vmem>>, vector<1x640xf32>
    %4 = vector.broadcast %3 : vector<1x640xf32> to vector<32x640xf32>
    %5 = arith.addf %2, %4 : vector<32x640xf32>
    %6 = vector.extract_strided_slice %5 {offsets = [0, 512], sizes = [32, 128], strides = [1, 1]} : vector<32x640xf32> to vector<32x128xf32>
    %7 = vector.extract_strided_slice %5 {offsets = [0, 0], sizes = [32, 512], strides = [1, 1]} : vector<32x640xf32> to vector<32x512xf32>
    %cst_5 = arith.constant 0.000000e+00 : f32
    %8 = vector.broadcast %cst_5 : f32 to vector<32x512xf32>
    %9 = arith.minimumf %7, %8 : vector<32x512xf32>
    %10 = math.exp %9 : vector<32x512xf32>
    %cst_6 = arith.constant 1.000000e+00 : f32
    %11 = vector.broadcast %cst_6 : f32 to vector<32x512xf32>
    %12 = arith.subf %10, %11 : vector<32x512xf32>
    %cst_7 = arith.constant 0.000000e+00 : f32
    %13 = vector.broadcast %cst_7 : f32 to vector<32x512xf32>
    %14 = arith.cmpf ogt, %7, %13 : vector<32x512xf32>
    %15 = arith.select %14, %7, %12 : vector<32x512xi1>, vector<32x512xf32>
    %16 = tpu.concatenate %15, %6 in 1 : vector<32x512xf32>, vector<32x128xf32> -> vector<32x640xf32>
    %c0_8 = arith.constant 0 : index
    %c0_9 = arith.constant 0 : index
    %17 = vector.load %arg4[%c0_8, %c0_9] : memref<640x384xf32, #tpu.memory_space<vmem>>, vector<640x384xf32>
    %cst_10 = arith.constant dense<0.000000e+00> : vector<32x384xf32>
    %18 = tpu.matmul %16, %17, %cst_10 {dimension_numbers = #tpu.dot_dimension_numbers<[1], [0], [0], [1], [0, 0, 1, 1], [], []>} : vector<32x640xf32>, vector<640x384xf32>, vector<32x384xf32> -> vector<32x384xf32>
    %c0_11 = arith.constant 0 : index
    %c0_12 = arith.constant 0 : index
    %19 = vector.load %arg5[%c0_11, %c0_12] : memref<1x384xf32, #tpu.memory_space<vmem>>, vector<1x384xf32>
    %20 = vector.broadcast %19 : vector<1x384xf32> to vector<32x384xf32>
    %21 = arith.addf %18, %20 : vector<32x384xf32>
    %22 = vector.extract_strided_slice %21 {offsets = [0, 0], sizes = [32, 128], strides = [1, 1]} : vector<32x384xf32> to vector<32x128xf32>
    %23 = arith.negf %22 : vector<32x128xf32>
    %24 = math.exp %23 : vector<32x128xf32>
    %cst_13 = arith.constant 1.000000e+00 : f32
    %25 = vector.broadcast %cst_13 : f32 to vector<32x128xf32>
    %26 = arith.addf %25, %24 : vector<32x128xf32>
    %27 = arith.divf %25, %26 : vector<32x128xf32>
    %28 = vector.extract_strided_slice %21 {offsets = [0, 128], sizes = [32, 128], strides = [1, 1]} : vector<32x384xf32> to vector<32x128xf32>
    %cst_14 = arith.constant 0.000000e+00 : f32
    %29 = vector.broadcast %cst_14 : f32 to vector<32x128xf32>
    %30 = arith.minimumf %28, %29 : vector<32x128xf32>
    %31 = math.exp %30 : vector<32x128xf32>
    %cst_15 = arith.constant 1.000000e+00 : f32
    %32 = vector.broadcast %cst_15 : f32 to vector<32x128xf32>
    %33 = arith.subf %31, %32 : vector<32x128xf32>
    %cst_16 = arith.constant 0.000000e+00 : f32
    %34 = vector.broadcast %cst_16 : f32 to vector<32x128xf32>
    %35 = arith.cmpf ogt, %28, %34 : vector<32x128xf32>
    %36 = arith.select %35, %28, %33 : vector<32x128xi1>, vector<32x128xf32>
    %37 = vector.extract_strided_slice %21 {offsets = [0, 256], sizes = [32, 128], strides = [1, 1]} : vector<32x384xf32> to vector<32x128xf32>
    %cst_17 = arith.constant 1.000000e+00 : f32
    %38 = vector.broadcast %cst_17 : f32 to vector<32x128xf32>
    %39 = arith.subf %38, %27 : vector<32x128xf32>
    %40 = arith.mulf %39, %37 : vector<32x128xf32>
    %41 = arith.mulf %27, %36 : vector<32x128xf32>
    %42 = arith.addf %40, %41 : vector<32x128xf32>
    %43 = arith.addf %42, %6 : vector<32x128xf32>
    %c0_18 = arith.constant 0 : index
    %c0_19 = arith.constant 0 : index
    %44 = vector.load %arg6[%c0_18, %c0_19] : memref<32x128xf32, #tpu.memory_space<vmem>>, vector<32x128xf32>
    tpu.vector_store %arg6[%c0_18, %c0_19], %43 {strides = array<i32>} : memref<32x128xf32, #tpu.memory_space<vmem>>, vector<32x128xf32>,
    return
  }
  func.func @transform_0(%arg0: i32) -> (i32, i32) {
    %c0_i32 = arith.constant 0 : i32
    %c0_i32_0 = arith.constant 0 : i32
    return %arg0, %c0_i32 : i32, i32
  }
  func.func @transform_1(%arg0: i32) -> (i32, i32) {
    %c0_i32 = arith.constant 0 : i32
    %c0_i32_0 = arith.constant 0 : i32
    %c0_i32_1 = arith.constant 0 : i32
    return %c0_i32, %c0_i32_0 : i32, i32
  }
  func.func @transform_2(%arg0: i32) -> (i32, i32) {
    %c0_i32 = arith.constant 0 : i32
    %c0_i32_0 = arith.constant 0 : i32
    %c0_i32_1 = arith.constant 0 : i32
    return %c0_i32, %c0_i32_0 : i32, i32
  }
  func.func @transform_3(%arg0: i32) -> (i32, i32) {
    %c0_i32 = arith.constant 0 : i32
    %c0_i32_0 = arith.constant 0 : i32
    %c0_i32_1 = arith.constant 0 : i32
    return %c0_i32, %c0_i32_0 : i32, i32
  }
  func.func @transform_4(%arg0: i32) -> (i32, i32) {
    %c0_i32 = arith.constant 0 : i32
    %c0_i32_0 = arith.constant 0 : i32
    %c0_i32_1 = arith.constant 0 : i32
    return %c0_i32, %c0_i32_0 : i32, i32
  }
  func.func @transform_5(%arg0: i32) -> (i32, i32) {
    %c0_i32 = arith.constant 0 : i32
    %c0_i32_0 = arith.constant 0 : i32
    return %arg0, %c0_i32 : i32, i32
  }
}

</mosaic_0001>

<llo_original>
// kernel: tpu_custom_call.1
$region0: #{tpu_custom_call.1}
  #allocation0 [shape = 'u32[]', space=smem, size = 0x4, offset = 0x4, fixed_abs, tag = 'smem constant byte address 0x4 - core index']
  #allocation1 [shape = 'u32[144,128]{1,0:T(1,128)}', space=vmem, size = 0x12000, scoped, tag = 'internal scratch']
  %s0 = inlined_call_operand.hbm [shape: f32[64,128], index: 0, kind: input, shape index: {}]
  %s1 = inlined_call_operand.hbm [shape: f32[128,640], index: 1, kind: input, shape index: {}]
  %s2 = inlined_call_operand.hbm [shape: f32[1,640], index: 2, kind: input, shape index: {}]
  %s3 = inlined_call_operand.hbm [shape: f32[640,384], index: 3, kind: input, shape index: {}]
  %s4 = inlined_call_operand.vmem [shape: f32[1,384], index: 4, kind: input, shape index: {}]
  %s5 = inlined_call_operand.hbm [shape: f32[64,128], index: 5, kind: output, shape index: {}]
  %s6 = sld [smem:[#allocation0]]
  $region69: #{tpu_custom_call.1} parent=0
    _
  %s8 = ssub.s32 1, %s6
  %s9 = scalar_select 0, %s8, %s6
  $region1: #{tpu_custom_call.1} parent=0
    #allocation2 [shape = 'u8[32768]{0}', space=vmem, size = 0x8000, scoped, tag = 'input window, operand 0']
    #allocation3 [shape = 's32[2]{0}', space=sflag, size = 0x8, scoped, tag = 'scoped memory for tpu_custom_call.1']
    #allocation4 [shape = 's32[2]{0}', space=sflag, size = 0x8, scoped, tag = 'scoped memory for tpu_custom_call.1']
    #allocation5 [shape = 'u8[327680]{0}', space=vmem, size = 0x50000, scoped, tag = 'input window, operand 1, single buffered']
    #allocation6 [shape = 's32[1]{0}', space=sflag, size = 0x4, scoped, tag = 'scoped memory for tpu_custom_call.1']
    #allocation7 [shape = 'u8[2560]{0}', space=vmem, size = 0xc00, scoped, tag = 'input window, operand 2, single buffered']
    #allocation8 [shape = 'u8[983040]{0}', space=vmem, size = 0xf0000, scoped, tag = 'input window, operand 3, single buffered']
    #allocation9 [shape = 's32[1]{0}', space=sflag, size = 0x4, scoped, tag = 'scoped memory for tpu_custom_call.1']
    #allocation10 [shape = 'u8[32768]{0}', space=vmem, size = 0x8000, scoped, tag = 'output window, operand 0']
    %10 = vsyncpa [#allocation3], 0
    %s11 = scalar_lea.sflag [#allocation3], 1
    %12 = vsyncpa %s11, 0
    %13 = vsyncpa [#allocation6], 0
    %14 = vsyncpa [#allocation9], 0
    %15 = vsyncpa [#allocation4], 0
    %s16 = scalar_lea.sflag [#allocation4], 1
    %17 = vsyncpa %s16, 0
    loop: start=0, step=1, limit=4
    $region2: #{tpu_custom_call.1} parent=1 // loop_pre_header
      _
    $region3: #{tpu_custom_call.1} parent=1 // loop_header
      %s19 = sphi 0, %s23
      %p20 = scmp.ge.s32.totalorder %s19, 4
      %s29 = sphi 0, %s31
      %s32 = sphi 0, %s29
      %s33 = sphi 0, %s32
      %s49 = sphi 0, %s33
      %s53 = sphi 0, %s53
      %s55 = sphi 0, %s53
      %s56 = sphi 0, %s55
      %s70 = sphi 0, %s56
      %s74 = sphi 0, %s74
      %s76 = sphi 0, %s74
      %s77 = sphi 0, %s76
      %s91 = sphi 0, %s77
      %s95 = sphi 0, %s95
      %s97 = sphi 0, %s95
      %s98 = sphi 0, %s97
      %s112 = sphi 0, %s98
      %s116 = sphi 0, %s116
      %s118 = sphi 0, %s116
      %s119 = sphi 0, %s118
      %s133 = sphi 0, %s119
      %s139 = sphi 0, %s141
      %s142 = sphi 0, %s139
      %s143 = sphi 0, %s142
      %s159 = sphi 0, %s143
    $region4: #{tpu_custom_call.1} parent=1 // loop_header_branch
      %22 = sbr.rel (%p20) target = $region8
    $region5: #{tpu_custom_call.1} parent=1 // loop_body
      %s24 = ssub.s32 %s19, 1
      %s25 = ssub.s32 %s19, 2
      %s26 = sadd.s32 %s19, 1
      %s27 = ssub.s32 %s19, %s26
      %p28 = scmp.eq.s32.totalorder %s27, 0
      %s30 = sadd.s32 %s29, 1
      %s31 = scalar_select %p28, %s29, %s30
      %p34 = pneg %p28
      %p35 = scmp.eq.s32.totalorder %s19, 1
      %p36 = por %p34, %p35
      %p37 = scmp.ne.s32.totalorder %s29, %s32
      %p38 = scmp.eq.s32.totalorder %s19, 0
      %p39 = por %p37, %p38
      %p40 = scmp.ne.s32.totalorder %s29, %s32
      %p41 = scmp.eq.s32.totalorder %s24, 1
      %p42 = por %p40, %p41
      %p43 = scmp.ne.s32.totalorder %s32, %s33
      %p44 = scmp.eq.s32.totalorder %s24, 0
      %p45 = por %p43, %p44
      %p46 = scmp.ne.s32.totalorder %s32, %s33
      %p47 = scmp.eq.s32.totalorder %s25, 1
      %p48 = por %p46, %p47
      %p50 = scmp.ne.s32.totalorder %s33, %s49
      %p51 = scmp.eq.s32.totalorder %s25, 0
      %p52 = por %p50, %p51
      %s54 = sadd.s32 %s53, 1
      %p57 = scmp.eq.s32.totalorder %s19, 1
      %p58 = scmp.ne.s32.totalorder %s53, %s55
      %p59 = scmp.eq.s32.totalorder %s19, 0
      %p60 = por %p58, %p59
      %p61 = scmp.ne.s32.totalorder %s53, %s55
      %p62 = scmp.eq.s32.totalorder %s24, 1
      %p63 = por %p61, %p62
      %p64 = scmp.ne.s32.totalorder %s55, %s56
      %p65 = scmp.eq.s32.totalorder %s24, 0
      %p66 = por %p64, %p65
      %p67 = scmp.ne.s32.totalorder %s55, %s56
      %p68 = scmp.eq.s32.totalorder %s25, 1
      %p69 = por %p67, %p68
      %p71 = scmp.ne.s32.totalorder %s56, %s70
      %p72 = scmp.eq.s32.totalorder %s25, 0
      %p73 = por %p71, %p72
      %s75 = sadd.s32 %s74, 1
      %p78 = scmp.eq.s32.totalorder %s19, 1
      %p79 = scmp.ne.s32.totalorder %s74, %s76
      %p80 = scmp.eq.s32.totalorder %s19, 0
      %p81 = por %p79, %p80
      %p82 = scmp.ne.s32.totalorder %s74, %s76
      %p83 = scmp.eq.s32.totalorder %s24, 1
      %p84 = por %p82, %p83
      %p85 = scmp.ne.s32.totalorder %s76, %s77
      %p86 = scmp.eq.s32.totalorder %s24, 0
      %p87 = por %p85, %p86
      %p88 = scmp.ne.s32.totalorder %s76, %s77
      %p89 = scmp.eq.s32.totalorder %s25, 1
      %p90 = por %p88, %p89
      %p92 = scmp.ne.s32.totalorder %s77, %s91
      %p93 = scmp.eq.s32.totalorder %s25, 0
      %p94 = por %p92, %p93
      %s96 = sadd.s32 %s95, 1
      %p99 = scmp.eq.s32.totalorder %s19, 1
      %p100 = scmp.ne.s32.totalorder %s95, %s97
      %p101 = scmp.eq.s32.totalorder %s19, 0
      %p102 = por %p100, %p101
      %p103 = scmp.ne.s32.totalorder %s95, %s97
      %p104 = scmp.eq.s32.totalorder %s24, 1
      %p105 = por %p103, %p104
      %p106 = scmp.ne.s32.totalorder %s97, %s98
      %p107 = scmp.eq.s32.totalorder %s24, 0
      %p108 = por %p106, %p107
      %p109 = scmp.ne.s32.totalorder %s97, %s98
      %p110 = scmp.eq.s32.totalorder %s25, 1
      %p111 = por %p109, %p110
      %p113 = scmp.ne.s32.totalorder %s98, %s112
      %p114 = scmp.eq.s32.totalorder %s25, 0
      %p115 = por %p113, %p114
      %s117 = sadd.s32 %s116, 1
      %p120 = scmp.eq.s32.totalorder %s19, 1
      %p121 = scmp.ne.s32.totalorder %s116, %s118
      %p122 = scmp.eq.s32.totalorder %s19, 0
      %p123 = por %p121, %p122
      %p124 = scmp.ne.s32.totalorder %s116, %s118
      %p125 = scmp.eq.s32.totalorder %s24, 1
      %p126 = por %p124, %p125
      %p127 = scmp.ne.s32.totalorder %s118, %s119
      %p128 = scmp.eq.s32.totalorder %s24, 0
      %p129 = por %p127, %p128
      %p130 = scmp.ne.s32.totalorder %s118, %s119
      %p131 = scmp.eq.s32.totalorder %s25, 1
      %p132 = por %p130, %p131
      %p134 = scmp.ne.s32.totalorder %s119, %s133
      %p135 = scmp.eq.s32.totalorder %s25, 0
      %p136 = por %p134, %p135
      %s137 = ssub.s32 %s19, %s26
      %p138 = scmp.eq.s32.totalorder %s137, 0
      %s140 = sadd.s32 %s139, 1
      %s141 = scalar_select %p138, %s139, %s140
      %p144 = pneg %p138
      %p145 = scmp.eq.s32.totalorder %s19, 1
      %p146 = por %p144, %p145
      %p147 = scmp.ne.s32.totalorder %s139, %s142
      %p148 = scmp.eq.s32.totalorder %s19, 0
      %p149 = por %p147, %p148
      %p150 = scmp.ne.s32.totalorder %s139, %s142
      %p151 = scmp.eq.s32.totalorder %s24, 1
      %p152 = por %p150, %p151
      %p153 = scmp.ne.s32.totalorder %s142, %s143
      %p154 = scmp.eq.s32.totalorder %s24, 0
      %p155 = por %p153, %p154
      %p156 = scmp.ne.s32.totalorder %s142, %s143
      %p157 = scmp.eq.s32.totalorder %s25, 1
      %p158 = por %p156, %p157
      %p160 = scmp.ne.s32.totalorder %s143, %s159
      %p161 = scmp.eq.s32.totalorder %s25, 0
      %p162 = por %p160, %p161
      %p163 = scmp.le.s32.totalorder 1, %s19
      %p164 = scmp.lt.s32.totalorder %s19, 3
      %p165 = pnand %p163, %p164
      %p166 = pneg %p165
      // Predicated region
      $region9: #{tpu_custom_call.1} parent=5 // pred_check
        _
      $region10: #{tpu_custom_call.1} parent=5 // pred_check_branch
        %168 = sbr.rel (%p165) target = $region12
      $region11: #{tpu_custom_call.1} parent=5 // pred_region
        %s169 = ssub.s32 %s19, 1
        // Predicated region
        $region13: #{tpu_custom_call.1} parent=11 // pred_check
          %p170 = pneg %p66
        $region14: #{tpu_custom_call.1} parent=11 // pred_check_branch
          %172 = sbr.rel (%p170) target = $region16
        $region15: #{tpu_custom_call.1} parent=11 // pred_region
          %s174 = ssub.s32 10240, 10240
          %175 = vsyncadd [#allocation6], %s174
          %s176 = sshll.u32 [#allocation5], 4
          %s177 = int_to_ptr.vmem [resolvable:$true] %s176
          %182 = dma.hbm_to_vmem [thread:$0]  %s1, 10240, %s177, [#allocation6], 640, 640, 40
        $region16: #{tpu_custom_call.1} parent=11 // pred_fallthru
          _
        // Predicated region
        $region17: #{tpu_custom_call.1} parent=11 // pred_check
          %p183 = pneg %p87
        $region18: #{tpu_custom_call.1} parent=11 // pred_check_branch
          %185 = sbr.rel (%p183) target = $region20
        $region19: #{tpu_custom_call.1} parent=11 // pred_region
          %s187 = ssub.s32 80, 80
          %188 = vsyncadd [#allocation6], %s187
          %s190 = sshll.u32 [#allocation7], 4
          %s191 = int_to_ptr.vmem [resolvable:$true] %s190
          %193 = dma.hbm_to_vmem [thread:$0]  %s2, 80, %s191, [#allocation6]
        $region20: #{tpu_custom_call.1} parent=11 // pred_fallthru
          _
        // Predicated region
        $region21: #{tpu_custom_call.1} parent=11 // pred_check
          %p194 = pneg %p108
        $region22: #{tpu_custom_call.1} parent=11 // pred_check_branch
          %196 = sbr.rel (%p194) target = $region24
        $region23: #{tpu_custom_call.1} parent=11 // pred_region
          %s198 = ssub.s32 30720, 30720
          %199 = vsyncadd [#allocation9], %s198
          %s200 = sshll.u32 [#allocation8], 4
          %s201 = int_to_ptr.vmem [resolvable:$true] %s200
          %206 = dma.hbm_to_vmem [thread:$0]  %s3, 30720, %s201, [#allocation9], 384, 384, 24
        $region24: #{tpu_custom_call.1} parent=11 // pred_fallthru
          _
        // Predicated region
        $region25: #{tpu_custom_call.1} parent=11 // pred_check
          %p207 = pneg %p129
        $region26: #{tpu_custom_call.1} parent=11 // pred_check_branch
          %209 = sbr.rel (%p207) target = $region28
        $region27: #{tpu_custom_call.1} parent=11 // pred_region
          _
        $region28: #{tpu_custom_call.1} parent=11 // pred_fallthru
          _
      $region12: #{tpu_custom_call.1} parent=5 // pred_fallthru
        _
      %p210 = scmp.lt.s32.totalorder %s19, 2
      // Predicated region
      $region29: #{tpu_custom_call.1} parent=5 // pred_check
        %p211 = pneg %p210
      $region30: #{tpu_custom_call.1} parent=5 // pred_check_branch
        %213 = sbr.rel (%p211) target = $region32
      $region31: #{tpu_custom_call.1} parent=5 // pred_region
        // Predicated region
        $region33: #{tpu_custom_call.1} parent=31 // pred_check
          %p214 = pneg %p39
        $region34: #{tpu_custom_call.1} parent=31 // pred_check_branch
          %216 = sbr.rel (%p214) target = $region36
        $region35: #{tpu_custom_call.1} parent=31 // pred_region
          %s217 = sand.u32 %s29, 1
          %s218 = scalar_lea.sflag [#allocation3], %s217
          %s219 = sand.u32 %s29, 1
          %s220 = smul.addr %s219, 32
          %s221 = scalar_lea.vmem [#allocation2], %s220
          %s222 = smul.u32 4, %s19
          %s224 = ssub.s32 512, 512
          %225 = vsyncadd %s218, %s224
          %s226 = smul.addr %s222, 128
          %s227 = scalar_lea.hbm %s0, %s226
          %s228 = sshll.u32 %s221, 4
          %s229 = int_to_ptr.vmem [resolvable:$true] %s228
          %234 = dma.hbm_to_vmem [thread:$0]  %s227, 512, %s229, %s218, 128, 128, 8
        $region36: #{tpu_custom_call.1} parent=31 // pred_fallthru
          _
      $region32: #{tpu_custom_call.1} parent=5 // pred_fallthru
        _
      %p235 = scmp.le.s32.totalorder 1, %s19
      %p236 = scmp.lt.s32.totalorder %s19, 3
      %p237 = pnand %p235, %p236
      %p238 = pneg %p237
      // Predicated region
      $region37: #{tpu_custom_call.1} parent=5 // pred_check
        _
      $region38: #{tpu_custom_call.1} parent=5 // pred_check_branch
        %240 = sbr.rel (%p237) target = $region40
      $region39: #{tpu_custom_call.1} parent=5 // pred_region
        %s241 = ssub.s32 %s19, 1
        %s242 = sand.u32 %s32, 1
        %s243 = scalar_lea.sflag [#allocation3], %s242
        %s244 = sand.u32 %s32, 1
        %s245 = smul.addr %s244, 32
        %s246 = scalar_lea.vmem [#allocation2], %s245
        // Predicated region
        $region41: #{tpu_custom_call.1} parent=39 // pred_check
          %p247 = pneg %p45
        $region42: #{tpu_custom_call.1} parent=39 // pred_check_branch
          %249 = sbr.rel (%p247) target = $region44
        $region43: #{tpu_custom_call.1} parent=39 // pred_region
          %250 = dma.done %s243, 512
        $region44: #{tpu_custom_call.1} parent=39 // pred_fallthru
          _
        // Predicated region
        $region45: #{tpu_custom_call.1} parent=39 // pred_check
          %p251 = pneg %p66
        $region46: #{tpu_custom_call.1} parent=39 // pred_check_branch
          %253 = sbr.rel (%p251) target = $region48
        $region47: #{tpu_custom_call.1} parent=39 // pred_region
          %254 = dma.done [#allocation6], 10240
        $region48: #{tpu_custom_call.1} parent=39 // pred_fallthru
          _
        // Predicated region
        $region49: #{tpu_custom_call.1} parent=39 // pred_check
          %p255 = pneg %p87
        $region50: #{tpu_custom_call.1} parent=39 // pred_check_branch
          %257 = sbr.rel (%p255) target = $region52
        $region51: #{tpu_custom_call.1} parent=39 // pred_region
          %258 = dma.done [#allocation6], 80
        $region52: #{tpu_custom_call.1} parent=39 // pred_fallthru
          _
        // Predicated region
        $region53: #{tpu_custom_call.1} parent=39 // pred_check
          %p259 = pneg %p108
        $region54: #{tpu_custom_call.1} parent=39 // pred_check_branch
          %261 = sbr.rel (%p259) target = $region56
        $region55: #{tpu_custom_call.1} parent=39 // pred_region
          %262 = dma.done [#allocation9], 30720
        $region56: #{tpu_custom_call.1} parent=39 // pred_fallthru
          _
        %s263 = sand.u32 %s32, 1
        %s264 = scalar_lea.sflag [#allocation3], %s263
        %s265 = sand.u32 %s32, 1
        %s266 = smul.addr %s265, 32
        %s267 = scalar_lea.vmem [#allocation2], %s266
        %p268 = pneg %p45
        %p269 = pneg %p42
        %p270 = pneg %p66
        %p271 = pneg %p63
        %p272 = pneg %p87
        %p273 = pneg %p84
        %p274 = pneg %p108
        %p275 = pneg %p105
        %p276 = pneg %p129
        %p277 = pneg %p126
        %p278 = pneg %p155
        %p279 = pneg %p152
        %s280 = sand.u32 %s142, 1
        %s281 = scalar_lea.sflag [#allocation4], %s280
        %s282 = sand.u32 %s142, 1
        %s283 = smul.addr %s282, 32
        %s284 = scalar_lea.vmem [#allocation10], %s283
        %s285 = smul.u32 4, %s24
        %s286 = smul.u32 4, %s24
        %v287 = vld [vmem:[%s246] sm:$0xff]
        %v288 = vld [vmem:[%s246 + $0x8] sm:$0xff]
        %v289 = vld [vmem:[%s246 + $0x10] sm:$0xff]
        %v290 = vld [vmem:[%s246 + $0x18] sm:$0xff]
        %v291 = vld [vmem:[#allocation5] sm:$0xff]
        %v292 = vld [vmem:[#allocation5 + $0x8] sm:$0xff]
        %v293 = vld [vmem:[#allocation5 + $0x10] sm:$0xff]
        %v294 = vld [vmem:[#allocation5 + $0x18] sm:$0xff]
        %v295 = vld [vmem:[#allocation5 + $0x20] sm:$0xff]
        %v296 = vld [vmem:[#allocation5 + $0x28] sm:$0xff]
        %v297 = vld [vmem:[#allocation5 + $0x30] sm:$0xff]
        %v298 = vld [vmem:[#allocation5 + $0x38] sm:$0xff]
        %v299 = vld [vmem:[#allocation5 + $0x40] sm:$0xff]
        %v300 = vld [vmem:[#allocation5 + $0x48] sm:$0xff]
        %v301 = vld [vmem:[#allocation5 + $0x50] sm:$0xff]
        %v302 = vld [vmem:[#allocation5 + $0x58] sm:$0xff]
        %v303 = vld [vmem:[#allocation5 + $0x60] sm:$0xff]
        %v304 = vld [vmem:[#allocation5 + $0x68] sm:$0xff]
        %v305 = vld [vmem:[#allocation5 + $0x70] sm:$0xff]
        %v306 = vld [vmem:[#allocation5 + $0x78] sm:$0xff]
        %v307 = vld [vmem:[#allocation5 + $0x80] sm:$0xff]
        %v308 = vld [vmem:[#allocation5 + $0x88] sm:$0xff]
        %v309 = vld [vmem:[#allocation5 + $0x90] sm:$0xff]
        %v310 = vld [vmem:[#allocation5 + $0x98] sm:$0xff]
        %v311 = vld [vmem:[#allocation5 + $0xa0] sm:$0xff]
        %v312 = vld [vmem:[#allocation5 + $0xa8] sm:$0xff]
        %v313 = vld [vmem:[#allocation5 + $0xb0] sm:$0xff]
        %v314 = vld [vmem:[#allocation5 + $0xb8] sm:$0xff]
        %v315 = vld [vmem:[#allocation5 + $0xc0] sm:$0xff]
        %v316 = vld [vmem:[#allocation5 + $0xc8] sm:$0xff]
        %v317 = vld [vmem:[#allocation5 + $0xd0] sm:$0xff]
        %v318 = vld [vmem:[#allocation5 + $0xd8] sm:$0xff]
        %v319 = vld [vmem:[#allocation5 + $0xe0] sm:$0xff]
        %v320 = vld [vmem:[#allocation5 + $0xe8] sm:$0xff]
        %v321 = vld [vmem:[#allocation5 + $0xf0] sm:$0xff]
        %v322 = vld [vmem:[#allocation5 + $0xf8] sm:$0xff]
        %v323 = vld [vmem:[#allocation5 + $0x100] sm:$0xff]
        %v324 = vld [vmem:[#allocation5 + $0x108] sm:$0xff]
        %v325 = vld [vmem:[#allocation5 + $0x110] sm:$0xff]
        %v326 = vld [vmem:[#allocation5 + $0x118] sm:$0xff]
        %v327 = vld [vmem:[#allocation5 + $0x120] sm:$0xff]
        %v328 = vld [vmem:[#allocation5 + $0x128] sm:$0xff]
        %v329 = vld [vmem:[#allocation5 + $0x130] sm:$0xff]
        %v330 = vld [vmem:[#allocation5 + $0x138] sm:$0xff]
        %v331 = vld [vmem:[#allocation5 + $0x140] sm:$0xff]
        %v332 = vld [vmem:[#allocation5 + $0x148] sm:$0xff]
        %v333 = vld [vmem:[#allocation5 + $0x150] sm:$0xff]
        %v334 = vld [vmem:[#allocation5 + $0x158] sm:$0xff]
        %v335 = vld [vmem:[#allocation5 + $0x160] sm:$0xff]
        %v336 = vld [vmem:[#allocation5 + $0x168] sm:$0xff]
        %v337 = vld [vmem:[#allocation5 + $0x170] sm:$0xff]
        %v338 = vld [vmem:[#allocation5 + $0x178] sm:$0xff]
        %v339 = vld [vmem:[#allocation5 + $0x180] sm:$0xff]
        %v340 = vld [vmem:[#allocation5 + $0x188] sm:$0xff]
        %v341 = vld [vmem:[#allocation5 + $0x190] sm:$0xff]
        %v342 = vld [vmem:[#allocation5 + $0x198] sm:$0xff]
        %v343 = vld [vmem:[#allocation5 + $0x1a0] sm:$0xff]
        %v344 = vld [vmem:[#allocation5 + $0x1a8] sm:$0xff]
        %v345 = vld [vmem:[#allocation5 + $0x1b0] sm:$0xff]
        %v346 = vld [vmem:[#allocation5 + $0x1b8] sm:$0xff]
        %v347 = vld [vmem:[#allocation5 + $0x1c0] sm:$0xff]
        %v348 = vld [vmem:[#allocation5 + $0x1c8] sm:$0xff]
        %v349 = vld [vmem:[#allocation5 + $0x1d0] sm:$0xff]
        %v350 = vld [vmem:[#allocation5 + $0x1d8] sm:$0xff]
        %v351 = vld [vmem:[#allocation5 + $0x1e0] sm:$0xff]
        %v352 = vld [vmem:[#allocation5 + $0x1e8] sm:$0xff]
        %v353 = vld [vmem:[#allocation5 + $0x1f0] sm:$0xff]
        %v354 = vld [vmem:[#allocation5 + $0x1f8] sm:$0xff]
        %v355 = vld [vmem:[#allocation5 + $0x200] sm:$0xff]
        %v356 = vld [vmem:[#allocation5 + $0x208] sm:$0xff]
        %v357 = vld [vmem:[#allocation5 + $0x210] sm:$0xff]
        %v358 = vld [vmem:[#allocation5 + $0x218] sm:$0xff]
        %v359 = vld [vmem:[#allocation5 + $0x220] sm:$0xff]
        %v360 = vld [vmem:[#allocation5 + $0x228] sm:$0xff]
        %v361 = vld [vmem:[#allocation5 + $0x230] sm:$0xff]
        %v362 = vld [vmem:[#allocation5 + $0x238] sm:$0xff]
        %v363 = vld [vmem:[#allocation5 + $0x240] sm:$0xff]
        %v364 = vld [vmem:[#allocation5 + $0x248] sm:$0xff]
        %v365 = vld [vmem:[#allocation5 + $0x250] sm:$0xff]
        %v366 = vld [vmem:[#allocation5 + $0x258] sm:$0xff]
        %v367 = vld [vmem:[#allocation5 + $0x260] sm:$0xff]
        %v368 = vld [vmem:[#allocation5 + $0x268] sm:$0xff]
        %v369 = vld [vmem:[#allocation5 + $0x270] sm:$0xff]
        %v370 = vld [vmem:[#allocation5 + $0x278] sm:$0xff]
        %v371 = vld [vmem:[#allocation7] sm:$0x1f]
        %v373 = vlaneseq
        %v374 = vshrl.u32 %v373, 7
        %v375 = vsub.s32 0, %v374
        %v376 = vrot.slane %v371, %v375
        %v377 = vlaneseq
        %v378 = vshrl.u32 %v377, 7
        %v379 = vsub.s32 1, %v378
        %v380 = vrot.slane %v371, %v379
        %v381 = vlaneseq
        %v382 = vshrl.u32 %v381, 7
        %v383 = vsub.s32 2, %v382
        %v384 = vrot.slane %v371, %v383
        %v385 = vlaneseq
        %v386 = vshrl.u32 %v385, 7
        %v387 = vsub.s32 3, %v386
        %v388 = vrot.slane %v371, %v387
        %v389 = vlaneseq
        %v390 = vshrl.u32 %v389, 7
        %v391 = vsub.s32 4, %v390
        %v392 = vrot.slane %v371, %v391
        %398 = vmatprep.subr.mxu0 %v367
        %399 = vmatpush1.msra.mxu0 %v366
        %400 = vmatprep.subr.mxu0 %v362
        %401 = vmatpush1.msra.mxu0 %v361
        %402 = vmatprep.subr.mxu0 %v357
        %403 = vmatpush1.msra.mxu0 %v356
        %404 = vmatprep.subr.mxu0 %v352
        %405 = vmatpush1.msra.mxu0 %v351
        %406 = vmatprep.subr.mxu0 %v347
        %407 = vmatpush1.msra.mxu0 %v346
        %408 = vmatprep.subr.mxu0 %v342
        %409 = vmatpush1.msra.mxu0 %v341
        %410 = vmatprep.subr.mxu0 %v337
        %411 = vmatpush1.msra.mxu0 %v336
        %412 = vmatprep.subr.mxu0 %v332
        %413 = vmatpush1.msra.mxu0 %v331
        %414 = vmatprep.subr.mxu0 %v327
        %415 = vmatpush1.msra.mxu0 %v326
        %416 = vmatprep.subr.mxu0 %v322
        %417 = vmatpush1.msra.mxu0 %v321
        %418 = vmatprep.subr.mxu0 %v317
        %419 = vmatpush1.msra.mxu0 %v316
        %420 = vmatprep.subr.mxu0 %v312
        %421 = vmatpush1.msra.mxu0 %v311
        %422 = vmatprep.subr.mxu0 %v307
        %423 = vmatpush1.msra.mxu0 %v306
        %424 = vmatprep.subr.mxu0 %v302
        %425 = vmatpush1.msra.mxu0 %v301
        %426 = vmatprep.subr.mxu0 %v297
        %427 = vmatpush1.msra.mxu0 %v296
        %428 = vmatprep.subr.mxu0 %v292
        %429 = vmatpush1.msra.mxu0 %v291
        %430 = vmatprep.subr.mxu0 0.0
        %431 = vmatpush2.msra.mxu0 0.0
        %432 = vmatprep.subr.mxu0 0.0
        %433 = vmatpush2.msra.mxu0 0.0
        %434 = vmatprep.subr.mxu0 0.0
        %435 = vmatpush2.msra.mxu0 0.0
        %436 = vmatprep.subr.mxu0 0.0
        %437 = vmatpush2.msra.mxu0 0.0
        %438 = vmatprep.subr.mxu0 0.0
        %439 = vmatpush2.msra.mxu0 0.0
        %440 = vmatprep.subr.mxu0 0.0
        %441 = vmatpush2.msra.mxu0 0.0
        %442 = vmatprep.subr.mxu0 0.0
        %443 = vmatpush2.msra.mxu0 0.0
        %444 = vmatprep.subr.mxu0 0.0
        %445 = vmatpush2.msra.mxu0 0.0
        %446 = vmatprep.subr.mxu0 0.0
        %447 = vmatpush2.msra.mxu0 0.0
        %448 = vmatprep.subr.mxu0 0.0
        %449 = vmatpush2.msra.mxu0 0.0
        %450 = vmatprep.subr.mxu0 0.0
        %451 = vmatpush2.msra.mxu0 0.0
        %452 = vmatprep.subr.mxu0 0.0
        %453 = vmatpush2.msra.mxu0 0.0
        %454 = vmatprep.subr.mxu0 0.0
        %455 = vmatpush2.msra.mxu0 0.0
        %456 = vmatprep.subr.mxu0 0.0
        %457 = vmatpush2.msra.mxu0 0.0
        %458 = vmatprep.subr.mxu0 0.0
        %459 = vmatpush2.msra.mxu0 0.0
        %460 = vmatprep.subr.mxu0 0.0
        %461 = vmatpush2.msra.mxu0 0.0
        %462 = vmatprep.mubr.f32.mxu0 0.0
        %463 = vmatmul.mubr.f32.gmra.mxu0 %v287
        %v464 = vpop.f32.mrf.mxu0
        %v465 = vadd.f32 %v376, %v464
        %v466 = vpop.f32.mrf.mxu0
        %v467 = vadd.f32 %v380, %v466
        %468 = vmatprep.mubr.f32.mxu0 0.0
        %469 = vmatmul.mubr.f32.gmra.mxu0 %v288
        %v470 = vpop.f32.mrf.mxu0
        %v471 = vadd.f32 %v376, %v470
        %v472 = vpop.f32.mrf.mxu0
        %v473 = vadd.f32 %v380, %v472
        %474 = vmatprep.mubr.f32.mxu0 0.0
        %475 = vmatmul.mubr.f32.gmra.mxu0 %v289
        %v476 = vpop.f32.mrf.mxu0
        %v477 = vadd.f32 %v376, %v476
        %v478 = vpop.f32.mrf.mxu0
        %v479 = vadd.f32 %v380, %v478
        %480 = vmatprep.mubr.f32.mxu0 0.0
        %481 = vmatmul.mubr.f32.gmra.mxu0 %v290
        %v482 = vpop.f32.mrf.mxu0
        %v483 = vadd.f32 %v376, %v482
        %v484 = vpop.f32.mrf.mxu0
        %v485 = vadd.f32 %v380, %v484
        %486 = vdwg.mxu0
        %487 = vmatprep.subr.mxu0 %v369
        %488 = vmatpush1.msra.mxu0 %v368
        %489 = vmatprep.subr.mxu0 %v364
        %490 = vmatpush1.msra.mxu0 %v363
        %491 = vmatprep.subr.mxu0 %v359
        %492 = vmatpush1.msra.mxu0 %v358
        %493 = vmatprep.subr.mxu0 %v354
        %494 = vmatpush1.msra.mxu0 %v353
        %495 = vmatprep.subr.mxu0 %v349
        %496 = vmatpush1.msra.mxu0 %v348
        %497 = vmatprep.subr.mxu0 %v344
        %498 = vmatpush1.msra.mxu0 %v343
        %499 = vmatprep.subr.mxu0 %v339
        %500 = vmatpush1.msra.mxu0 %v338
        %501 = vmatprep.subr.mxu0 %v334
        %502 = vmatpush1.msra.mxu0 %v333
        %503 = vmatprep.subr.mxu0 %v329
        %504 = vmatpush1.msra.mxu0 %v328
        %505 = vmatprep.subr.mxu0 %v324
        %506 = vmatpush1.msra.mxu0 %v323
        %507 = vmatprep.subr.mxu0 %v319
        %508 = vmatpush1.msra.mxu0 %v318
        %509 = vmatprep.subr.mxu0 %v314
        %510 = vmatpush1.msra.mxu0 %v313
        %511 = vmatprep.subr.mxu0 %v309
        %512 = vmatpush1.msra.mxu0 %v308
        %513 = vmatprep.subr.mxu0 %v304
        %514 = vmatpush1.msra.mxu0 %v303
        %515 = vmatprep.subr.mxu0 %v299
        %516 = vmatpush1.msra.mxu0 %v298
        %517 = vmatprep.subr.mxu0 %v294
        %518 = vmatpush1.msra.mxu0 %v293
        %519 = vmatprep.subr.mxu0 0.0
        %520 = vmatpush2.msra.mxu0 0.0
        %521 = vmatprep.subr.mxu0 0.0
        %522 = vmatpush2.msra.mxu0 0.0
        %523 = vmatprep.subr.mxu0 0.0
        %524 = vmatpush2.msra.mxu0 0.0
        %525 = vmatprep.subr.mxu0 0.0
        %526 = vmatpush2.msra.mxu0 0.0
        %527 = vmatprep.subr.mxu0 0.0
        %528 = vmatpush2.msra.mxu0 0.0
        %529 = vmatprep.subr.mxu0 0.0
        %530 = vmatpush2.msra.mxu0 0.0
        %531 = vmatprep.subr.mxu0 0.0
        %532 = vmatpush2.msra.mxu0 0.0
        %533 = vmatprep.subr.mxu0 0.0
        %534 = vmatpush2.msra.mxu0 0.0
        %535 = vmatprep.subr.mxu0 0.0
        %536 = vmatpush2.msra.mxu0 0.0
        %537 = vmatprep.subr.mxu0 0.0
        %538 = vmatpush2.msra.mxu0 0.0
        %539 = vmatprep.subr.mxu0 0.0
        %540 = vmatpush2.msra.mxu0 0.0
        %541 = vmatprep.subr.mxu0 0.0
        %542 = vmatpush2.msra.mxu0 0.0
        %543 = vmatprep.subr.mxu0 0.0
        %544 = vmatpush2.msra.mxu0 0.0
        %545 = vmatprep.subr.mxu0 0.0
        %546 = vmatpush2.msra.mxu0 0.0
        %547 = vmatprep.subr.mxu0 0.0
        %548 = vmatpush2.msra.mxu0 0.0
        %549 = vmatprep.subr.mxu0 0.0
        %550 = vmatpush2.msra.mxu0 0.0
        %551 = vmatprep.mubr.f32.mxu0 0.0
        %552 = vmatmul.mubr.f32.gmra.mxu0 %v287
        %v553 = vpop.f32.mrf.mxu0
        %v554 = vadd.f32 %v384, %v553
        %v555 = vpop.f32.mrf.mxu0
        %v556 = vadd.f32 %v388, %v555
        %557 = vmatprep.mubr.f32.mxu0 0.0
        %558 = vmatmul.mubr.f32.gmra.mxu0 %v288
        %v559 = vpop.f32.mrf.mxu0
        %v560 = vadd.f32 %v384, %v559
        %v561 = vpop.f32.mrf.mxu0
        %v562 = vadd.f32 %v388, %v561
        %563 = vmatprep.mubr.f32.mxu0 0.0
        %564 = vmatmul.mubr.f32.gmra.mxu0 %v289
        %v565 = vpop.f32.mrf.mxu0
        %v566 = vadd.f32 %v384, %v565
        %v567 = vpop.f32.mrf.mxu0
        %v568 = vadd.f32 %v388, %v567
        %569 = vmatprep.mubr.f32.mxu0 0.0
        %570 = vmatmul.mubr.f32.gmra.mxu0 %v290
        %v571 = vpop.f32.mrf.mxu0
        %v572 = vadd.f32 %v384, %v571
        %v573 = vpop.f32.mrf.mxu0
        %v574 = vadd.f32 %v388, %v573
        %575 = vdwg.mxu0
        %576 = vmatprep.subr.mxu0 0.0
        %577 = vmatpush1.msra.mxu0 %v370
        %578 = vmatprep.subr.mxu0 0.0
        %579 = vmatpush1.msra.mxu0 %v365
        %580 = vmatprep.subr.mxu0 0.0
        %581 = vmatpush1.msra.mxu0 %v360
        %582 = vmatprep.subr.mxu0 0.0
        %583 = vmatpush1.msra.mxu0 %v355
        %584 = vmatprep.subr.mxu0 0.0
        %585 = vmatpush1.msra.mxu0 %v350
        %586 = vmatprep.subr.mxu0 0.0
        %587 = vmatpush1.msra.mxu0 %v345
        %588 = vmatprep.subr.mxu0 0.0
        %589 = vmatpush1.msra.mxu0 %v340
        %590 = vmatprep.subr.mxu0 0.0
        %591 = vmatpush1.msra.mxu0 %v335
        %592 = vmatprep.subr.mxu0 0.0
        %593 = vmatpush1.msra.mxu0 %v330
        %594 = vmatprep.subr.mxu0 0.0
        %595 = vmatpush1.msra.mxu0 %v325
        %596 = vmatprep.subr.mxu0 0.0
        %597 = vmatpush1.msra.mxu0 %v320
        %598 = vmatprep.subr.mxu0 0.0
        %599 = vmatpush1.msra.mxu0 %v315
        %600 = vmatprep.subr.mxu0 0.0
        %601 = vmatpush1.msra.mxu0 %v310
        %602 = vmatprep.subr.mxu0 0.0
        %603 = vmatpush1.msra.mxu0 %v305
        %604 = vmatprep.subr.mxu0 0.0
        %605 = vmatpush1.msra.mxu0 %v300
        %606 = vmatprep.subr.mxu0 0.0
        %607 = vmatpush1.msra.mxu0 %v295
        %608 = vmatprep.subr.mxu0 0.0
        %609 = vmatpush2.msra.mxu0 0.0
        %610 = vmatprep.subr.mxu0 0.0
        %611 = vmatpush2.msra.mxu0 0.0
        %612 = vmatprep.subr.mxu0 0.0
        %613 = vmatpush2.msra.mxu0 0.0
        %614 = vmatprep.subr.mxu0 0.0
        %615 = vmatpush2.msra.mxu0 0.0
        %616 = vmatprep.subr.mxu0 0.0
        %617 = vmatpush2.msra.mxu0 0.0
        %618 = vmatprep.subr.mxu0 0.0
        %619 = vmatpush2.msra.mxu0 0.0
        %620 = vmatprep.subr.mxu0 0.0
        %621 = vmatpush2.msra.mxu0 0.0
        %622 = vmatprep.subr.mxu0 0.0
        %623 = vmatpush2.msra.mxu0 0.0
        %624 = vmatprep.subr.mxu0 0.0
        %625 = vmatpush2.msra.mxu0 0.0
        %626 = vmatprep.subr.mxu0 0.0
        %627 = vmatpush2.msra.mxu0 0.0
        %628 = vmatprep.subr.mxu0 0.0
        %629 = vmatpush2.msra.mxu0 0.0
        %630 = vmatprep.subr.mxu0 0.0
        %631 = vmatpush2.msra.mxu0 0.0
        %632 = vmatprep.subr.mxu0 0.0
        %633 = vmatpush2.msra.mxu0 0.0
        %634 = vmatprep.subr.mxu0 0.0
        %635 = vmatpush2.msra.mxu0 0.0
        %636 = vmatprep.subr.mxu0 0.0
        %637 = vmatpush2.msra.mxu0 0.0
        %638 = vmatprep.subr.mxu0 0.0
        %639 = vmatpush2.msra.mxu0 0.0
        %640 = vmatprep.mubr.f32.mxu0 0.0
        %641 = vmatmul.mubr.f32.gmra.mxu0 %v287
        %v642 = vpop.f32.mrf.mxu0
        %v643 = vadd.f32 %v392, %v642
        %v644 = vpop.f32.mrf.mxu0
        %645 = vmatprep.mubr.f32.mxu0 0.0
        %646 = vmatmul.mubr.f32.gmra.mxu0 %v288
        %v647 = vpop.f32.mrf.mxu0
        %v648 = vadd.f32 %v392, %v647
        %v649 = vpop.f32.mrf.mxu0
        %650 = vmatprep.mubr.f32.mxu0 0.0
        %651 = vmatmul.mubr.f32.gmra.mxu0 %v289
        %v652 = vpop.f32.mrf.mxu0
        %v653 = vadd.f32 %v392, %v652
        %v654 = vpop.f32.mrf.mxu0
        %655 = vmatprep.mubr.f32.mxu0 0.0
        %656 = vmatmul.mubr.f32.gmra.mxu0 %v290
        %v657 = vpop.f32.mrf.mxu0
        %v658 = vadd.f32 %v392, %v657
        %v659 = vpop.f32.mrf.mxu0
        %660 = vdwg.mxu0
        %v661 = vmin.f32 %v465, 0.0
        %v662 = vmin.f32 %v467, 0.0
        %v663 = vmin.f32 %v554, 0.0
        %v664 = vmin.f32 %v556, 0.0
        %v665 = vmin.f32 %v471, 0.0
        %v666 = vmin.f32 %v473, 0.0
        %v667 = vmin.f32 %v560, 0.0
        %v668 = vmin.f32 %v562, 0.0
        %v669 = vmin.f32 %v477, 0.0
        %v670 = vmin.f32 %v479, 0.0
        %v671 = vmin.f32 %v566, 0.0
        %v672 = vmin.f32 %v568, 0.0
        %v673 = vmin.f32 %v483, 0.0
        %v674 = vmin.f32 %v485, 0.0
        %v675 = vmin.f32 %v572, 0.0
        %v676 = vmin.f32 %v574, 0.0
        %v677 = vmul.f32 %v661, 1.442695
        %v678 = vpow.pop %v677
        %v679 = vmul.f32 %v662, 1.442695
        %v680 = vpow.pop %v679
        %v681 = vmul.f32 %v663, 1.442695
        %v682 = vpow.pop %v681
        %v683 = vmul.f32 %v664, 1.442695
        %v684 = vpow.pop %v683
        %v685 = vmul.f32 %v665, 1.442695
        %v686 = vpow.pop %v685
        %v687 = vmul.f32 %v666, 1.442695
        %v688 = vpow.pop %v687
        %v689 = vmul.f32 %v667, 1.442695
        %v690 = vpow.pop %v689
        %v691 = vmul.f32 %v668, 1.442695
        %v692 = vpow.pop %v691
        %v693 = vmul.f32 %v669, 1.442695
        %v694 = vpow.pop %v693
        %v695 = vmul.f32 %v670, 1.442695
        %v696 = vpow.pop %v695
        %v697 = vmul.f32 %v671, 1.442695
        %v698 = vpow.pop %v697
        %v699 = vmul.f32 %v672, 1.442695
        %v700 = vpow.pop %v699
        %v701 = vmul.f32 %v673, 1.442695
        %v702 = vpow.pop %v701
        %v703 = vmul.f32 %v674, 1.442695
        %v704 = vpow.pop %v703
        %v705 = vmul.f32 %v675, 1.442695
        %v706 = vpow.pop %v705
        %v707 = vmul.f32 %v676, 1.442695
        %v708 = vpow.pop %v707
        %v709 = vsub.f32 %v678, 1.0
        %v710 = vsub.f32 %v680, 1.0
        %v711 = vsub.f32 %v682, 1.0
        %v712 = vsub.f32 %v684, 1.0
        %v713 = vsub.f32 %v686, 1.0
        %v714 = vsub.f32 %v688, 1.0
        %v715 = vsub.f32 %v690, 1.0
        %v716 = vsub.f32 %v692, 1.0
        %v717 = vsub.f32 %v694, 1.0
        %v718 = vsub.f32 %v696, 1.0
        %v719 = vsub.f32 %v698, 1.0
        %v720 = vsub.f32 %v700, 1.0
        %v721 = vsub.f32 %v702, 1.0
        %v722 = vsub.f32 %v704, 1.0
        %v723 = vsub.f32 %v706, 1.0
        %v724 = vsub.f32 %v708, 1.0
        %vm725 = vcmp.gt.f32.partialorder %v465, 0.0
        %vm726 = vcmp.gt.f32.partialorder %v467, 0.0
        %vm727 = vcmp.gt.f32.partialorder %v554, 0.0
        %vm728 = vcmp.gt.f32.partialorder %v556, 0.0
        %vm729 = vcmp.gt.f32.partialorder %v471, 0.0
        %vm730 = vcmp.gt.f32.partialorder %v473, 0.0
        %vm731 = vcmp.gt.f32.partialorder %v560, 0.0
        %vm732 = vcmp.gt.f32.partialorder %v562, 0.0
        %vm733 = vcmp.gt.f32.partialorder %v477, 0.0
        %vm734 = vcmp.gt.f32.partialorder %v479, 0.0
        %vm735 = vcmp.gt.f32.partialorder %v566, 0.0
        %vm736 = vcmp.gt.f32.partialorder %v568, 0.0
        %vm737 = vcmp.gt.f32.partialorder %v483, 0.0
        %vm738 = vcmp.gt.f32.partialorder %v485, 0.0
        %vm739 = vcmp.gt.f32.partialorder %v572, 0.0
        %vm740 = vcmp.gt.f32.partialorder %v574, 0.0
        %v741 = vsel %vm725, %v465, %v709
        %v742 = vsel %vm726, %v467, %v710
        %v743 = vsel %vm727, %v554, %v711
        %v744 = vsel %vm728, %v556, %v712
        %v745 = vsel %vm729, %v471, %v713
        %v746 = vsel %vm730, %v473, %v714
        %v747 = vsel %vm731, %v560, %v715
        %v748 = vsel %vm732, %v562, %v716
        %v749 = vsel %vm733, %v477, %v717
        %v750 = vsel %vm734, %v479, %v718
        %v751 = vsel %vm735, %v566, %v719
        %v752 = vsel %vm736, %v568, %v720
        %v753 = vsel %vm737, %v483, %v721
        %v754 = vsel %vm738, %v485, %v722
        %v755 = vsel %vm739, %v572, %v723
        %v756 = vsel %vm740, %v574, %v724
        %v757 = vld [vmem:[#allocation8] sm:$0xff]
        %v758 = vld [vmem:[#allocation8 + $0x8] sm:$0xff]
        %v759 = vld [vmem:[#allocation8 + $0x10] sm:$0xff]
        %v760 = vld [vmem:[#allocation8 + $0x18] sm:$0xff]
        %v761 = vld [vmem:[#allocation8 + $0x20] sm:$0xff]
        %v762 = vld [vmem:[#allocation8 + $0x28] sm:$0xff]
        %v763 = vld [vmem:[#allocation8 + $0x30] sm:$0xff]
        %v764 = vld [vmem:[#allocation8 + $0x38] sm:$0xff]
        %v765 = vld [vmem:[#allocation8 + $0x40] sm:$0xff]
        %v766 = vld [vmem:[#allocation8 + $0x48] sm:$0xff]
        %v767 = vld [vmem:[#allocation8 + $0x50] sm:$0xff]
        %v768 = vld [vmem:[#allocation8 + $0x58] sm:$0xff]
        %v769 = vld [vmem:[#allocation8 + $0x60] sm:$0xff]
        %v770 = vld [vmem:[#allocation8 + $0x68] sm:$0xff]
        %v771 = vld [vmem:[#allocation8 + $0x70] sm:$0xff]
        %v772 = vld [vmem:[#allocation8 + $0x78] sm:$0xff]
        %v773 = vld [vmem:[#allocation8 + $0x80] sm:$0xff]
        %v774 = vld [vmem:[#allocation8 + $0x88] sm:$0xff]
        %v775 = vld [vmem:[#allocation8 + $0x90] sm:$0xff]
        %v776 = vld [vmem:[#allocation8 + $0x98] sm:$0xff]
        %v777 = vld [vmem:[#allocation8 + $0xa0] sm:$0xff]
        %v778 = vld [vmem:[#allocation8 + $0xa8] sm:$0xff]
        %v779 = vld [vmem:[#allocation8 + $0xb0] sm:$0xff]
        %v780 = vld [vmem:[#allocation8 + $0xb8] sm:$0xff]
        %v781 = vld [vmem:[#allocation8 + $0xc0] sm:$0xff]
        %v782 = vld [vmem:[#allocation8 + $0xc8] sm:$0xff]
        %v783 = vld [vmem:[#allocation8 + $0xd0] sm:$0xff]
        %v784 = vld [vmem:[#allocation8 + $0xd8] sm:$0xff]
        %v785 = vld [vmem:[#allocation8 + $0xe0] sm:$0xff]
        %v786 = vld [vmem:[#allocation8 + $0xe8] sm:$0xff]
        %v787 = vld [vmem:[#allocation8 + $0xf0] sm:$0xff]
        %v788 = vld [vmem:[#allocation8 + $0xf8] sm:$0xff]
        %v789 = vld [vmem:[#allocation8 + $0x100] sm:$0xff]
        %v790 = vld [vmem:[#allocation8 + $0x108] sm:$0xff]
        %v791 = vld [vmem:[#allocation8 + $0x110] sm:$0xff]
        %v792 = vld [vmem:[#allocation8 + $0x118] sm:$0xff]
        %v793 = vld [vmem:[#allocation8 + $0x120] sm:$0xff]
        %v794 = vld [vmem:[#allocation8 + $0x128] sm:$0xff]
        %v795 = vld [vmem:[#allocation8 + $0x130] sm:$0xff]
        %v796 = vld [vmem:[#allocation8 + $0x138] sm:$0xff]
        %v797 = vld [vmem:[#allocation8 + $0x140] sm:$0xff]
        %v798 = vld [vmem:[#allocation8 + $0x148] sm:$0xff]
        %v799 = vld [vmem:[#allocation8 + $0x150] sm:$0xff]
        %v800 = vld [vmem:[#allocation8 + $0x158] sm:$0xff]
        %v801 = vld [vmem:[#allocation8 + $0x160] sm:$0xff]
        %v802 = vld [vmem:[#allocation8 + $0x168] sm:$0xff]
        %v803 = vld [vmem:[#allocation8 + $0x170] sm:$0xff]
        %v804 = vld [vmem:[#allocation8 + $0x178] sm:$0xff]
        %v805 = vld [vmem:[#allocation8 + $0x180] sm:$0xff]
        %v806 = vld [vmem:[#allocation8 + $0x188] sm:$0xff]
        %v807 = vld [vmem:[#allocation8 + $0x190] sm:$0xff]
        %v808 = vld [vmem:[#allocation8 + $0x198] sm:$0xff]
        %v809 = vld [vmem:[#allocation8 + $0x1a0] sm:$0xff]
        %v810 = vld [vmem:[#allocation8 + $0x1a8] sm:$0xff]
        %v811 = vld [vmem:[#allocation8 + $0x1b0] sm:$0xff]
        %v812 = vld [vmem:[#allocation8 + $0x1b8] sm:$0xff]
        %v813 = vld [vmem:[#allocation8 + $0x1c0] sm:$0xff]
        %v814 = vld [vmem:[#allocation8 + $0x1c8] sm:$0xff]
        %v815 = vld [vmem:[#allocation8 + $0x1d0] sm:$0xff]
        %v816 = vld [vmem:[#allocation8 + $0x1d8] sm:$0xff]
        %v817 = vld [vmem:[#allocation8 + $0x1e0] sm:$0xff]
        %v818 = vld [vmem:[#allocation8 + $0x1e8] sm:$0xff]
        %v819 = vld [vmem:[#allocation8 + $0x1f0] sm:$0xff]
        %v820 = vld [vmem:[#allocation8 + $0x1f8] sm:$0xff]
        %v821 = vld [vmem:[#allocation8 + $0x200] sm:$0xff]
        %v822 = vld [vmem:[#allocation8 + $0x208] sm:$0xff]
        %v823 = vld [vmem:[#allocation8 + $0x210] sm:$0xff]
        %v824 = vld [vmem:[#allocation8 + $0x218] sm:$0xff]
        %v825 = vld [vmem:[#allocation8 + $0x220] sm:$0xff]
        %v826 = vld [vmem:[#allocation8 + $0x228] sm:$0xff]
        %v827 = vld [vmem:[#allocation8 + $0x230] sm:$0xff]
        %v828 = vld [vmem:[#allocation8 + $0x238] sm:$0xff]
        %v829 = vld [vmem:[#allocation8 + $0x240] sm:$0xff]
        %v830 = vld [vmem:[#allocation8 + $0x248] sm:$0xff]
        %v831 = vld [vmem:[#allocation8 + $0x250] sm:$0xff]
        %v832 = vld [vmem:[#allocation8 + $0x258] sm:$0xff]
        %v833 = vld [vmem:[#allocation8 + $0x260] sm:$0xff]
        %v834 = vld [vmem:[#allocation8 + $0x268] sm:$0xff]
        %v835 = vld [vmem:[#allocation8 + $0x270] sm:$0xff]
        %v836 = vld [vmem:[#allocation8 + $0x278] sm:$0xff]
        %v837 = vld [vmem:[#allocation8 + $0x280] sm:$0xff]
        %v838 = vld [vmem:[#allocation8 + $0x288] sm:$0xff]
        %v839 = vld [vmem:[#allocation8 + $0x290] sm:$0xff]
        %v840 = vld [vmem:[#allocation8 + $0x298] sm:$0xff]
        %v841 = vld [vmem:[#allocation8 + $0x2a0] sm:$0xff]
        %v842 = vld [vmem:[#allocation8 + $0x2a8] sm:$0xff]
        %v843 = vld [vmem:[#allocation8 + $0x2b0] sm:$0xff]
        %v844 = vld [vmem:[#allocation8 + $0x2b8] sm:$0xff]
        %v845 = vld [vmem:[#allocation8 + $0x2c0] sm:$0xff]
        %v846 = vld [vmem:[#allocation8 + $0x2c8] sm:$0xff]
        %v847 = vld [vmem:[#allocation8 + $0x2d0] sm:$0xff]
        %v848 = vld [vmem:[#allocation8 + $0x2d8] sm:$0xff]
        %v849 = vld [vmem:[#allocation8 + $0x2e0] sm:$0xff]
        %v850 = vld [vmem:[#allocation8 + $0x2e8] sm:$0xff]
        %v851 = vld [vmem:[#allocation8 + $0x2f0] sm:$0xff]
        %v852 = vld [vmem:[#allocation8 + $0x2f8] sm:$0xff]
        %v853 = vld [vmem:[#allocation8 + $0x300] sm:$0xff]
        %v854 = vld [vmem:[#allocation8 + $0x308] sm:$0xff]
        %v855 = vld [vmem:[#allocation8 + $0x310] sm:$0xff]
        %v856 = vld [vmem:[#allocation8 + $0x318] sm:$0xff]
        %v857 = vld [vmem:[#allocation8 + $0x320] sm:$0xff]
        %v858 = vld [vmem:[#allocation8 + $0x328] sm:$0xff]
        %v859 = vld [vmem:[#allocation8 + $0x330] sm:$0xff]
        %v860 = vld [vmem:[#allocation8 + $0x338] sm:$0xff]
        %v861 = vld [vmem:[#allocation8 + $0x340] sm:$0xff]
        %v862 = vld [vmem:[#allocation8 + $0x348] sm:$0xff]
        %v863 = vld [vmem:[#allocation8 + $0x350] sm:$0xff]
        %v864 = vld [vmem:[#allocation8 + $0x358] sm:$0xff]
        %v865 = vld [vmem:[#allocation8 + $0x360] sm:$0xff]
        %v866 = vld [vmem:[#allocation8 + $0x368] sm:$0xff]
        %v867 = vld [vmem:[#allocation8 + $0x370] sm:$0xff]
        %v868 = vld [vmem:[#allocation8 + $0x378] sm:$0xff]
        %v869 = vld [vmem:[#allocation8 + $0x380] sm:$0xff]
        %v870 = vld [vmem:[#allocation8 + $0x388] sm:$0xff]
        %v871 = vld [vmem:[#allocation8 + $0x390] sm:$0xff]
        %v872 = vld [vmem:[#allocation8 + $0x398] sm:$0xff]
        %v873 = vld [vmem:[#allocation8 + $0x3a0] sm:$0xff]
        %v874 = vld [vmem:[#allocation8 + $0x3a8] sm:$0xff]
        %v875 = vld [vmem:[#allocation8 + $0x3b0] sm:$0xff]
        %v876 = vld [vmem:[#allocation8 + $0x3b8] sm:$0xff]
        %v877 = vld [vmem:[#allocation8 + $0x3c0] sm:$0xff]
        %v878 = vld [vmem:[#allocation8 + $0x3c8] sm:$0xff]
        %v879 = vld [vmem:[#allocation8 + $0x3d0] sm:$0xff]
        %v880 = vld [vmem:[#allocation8 + $0x3d8] sm:$0xff]
        %v881 = vld [vmem:[#allocation8 + $0x3e0] sm:$0xff]
        %v882 = vld [vmem:[#allocation8 + $0x3e8] sm:$0xff]
        %v883 = vld [vmem:[#allocation8 + $0x3f0] sm:$0xff]
        %v884 = vld [vmem:[#allocation8 + $0x3f8] sm:$0xff]
        %v885 = vld [vmem:[#allocation8 + $0x400] sm:$0xff]
        %v886 = vld [vmem:[#allocation8 + $0x408] sm:$0xff]
        %v887 = vld [vmem:[#allocation8 + $0x410] sm:$0xff]
        %v888 = vld [vmem:[#allocation8 + $0x418] sm:$0xff]
        %v889 = vld [vmem:[#allocation8 + $0x420] sm:$0xff]
        %v890 = vld [vmem:[#allocation8 + $0x428] sm:$0xff]
        %v891 = vld [vmem:[#allocation8 + $0x430] sm:$0xff]
        %v892 = vld [vmem:[#allocation8 + $0x438] sm:$0xff]
        %v893 = vld [vmem:[#allocation8 + $0x440] sm:$0xff]
        %v894 = vld [vmem:[#allocation8 + $0x448] sm:$0xff]
        %v895 = vld [vmem:[#allocation8 + $0x450] sm:$0xff]
        %v896 = vld [vmem:[#allocation8 + $0x458] sm:$0xff]
        %v897 = vld [vmem:[#allocation8 + $0x460] sm:$0xff]
        %v898 = vld [vmem:[#allocation8 + $0x468] sm:$0xff]
        %v899 = vld [vmem:[#allocation8 + $0x470] sm:$0xff]
        %v900 = vld [vmem:[#allocation8 + $0x478] sm:$0xff]
        %v901 = vld [vmem:[#allocation8 + $0x480] sm:$0xff]
        %v902 = vld [vmem:[#allocation8 + $0x488] sm:$0xff]
        %v903 = vld [vmem:[#allocation8 + $0x490] sm:$0xff]
        %v904 = vld [vmem:[#allocation8 + $0x498] sm:$0xff]
        %v905 = vld [vmem:[#allocation8 + $0x4a0] sm:$0xff]
        %v906 = vld [vmem:[#allocation8 + $0x4a8] sm:$0xff]
        %v907 = vld [vmem:[#allocation8 + $0x4b0] sm:$0xff]
        %v908 = vld [vmem:[#allocation8 + $0x4b8] sm:$0xff]
        %v909 = vld [vmem:[#allocation8 + $0x4c0] sm:$0xff]
        %v910 = vld [vmem:[#allocation8 + $0x4c8] sm:$0xff]
        %v911 = vld [vmem:[#allocation8 + $0x4d0] sm:$0xff]
        %v912 = vld [vmem:[#allocation8 + $0x4d8] sm:$0xff]
        %v913 = vld [vmem:[#allocation8 + $0x4e0] sm:$0xff]
        %v914 = vld [vmem:[#allocation8 + $0x4e8] sm:$0xff]
        %v915 = vld [vmem:[#allocation8 + $0x4f0] sm:$0xff]
        %v916 = vld [vmem:[#allocation8 + $0x4f8] sm:$0xff]
        %v917 = vld [vmem:[#allocation8 + $0x500] sm:$0xff]
        %v918 = vld [vmem:[#allocation8 + $0x508] sm:$0xff]
        %v919 = vld [vmem:[#allocation8 + $0x510] sm:$0xff]
        %v920 = vld [vmem:[#allocation8 + $0x518] sm:$0xff]
        %v921 = vld [vmem:[#allocation8 + $0x520] sm:$0xff]
        %v922 = vld [vmem:[#allocation8 + $0x528] sm:$0xff]
        %v923 = vld [vmem:[#allocation8 + $0x530] sm:$0xff]
        %v924 = vld [vmem:[#allocation8 + $0x538] sm:$0xff]
        %v925 = vld [vmem:[#allocation8 + $0x540] sm:$0xff]
        %v926 = vld [vmem:[#allocation8 + $0x548] sm:$0xff]
        %v927 = vld [vmem:[#allocation8 + $0x550] sm:$0xff]
        %v928 = vld [vmem:[#allocation8 + $0x558] sm:$0xff]
        %v929 = vld [vmem:[#allocation8 + $0x560] sm:$0xff]
        %v930 = vld [vmem:[#allocation8 + $0x568] sm:$0xff]
        %v931 = vld [vmem:[#allocation8 + $0x570] sm:$0xff]
        %v932 = vld [vmem:[#allocation8 + $0x578] sm:$0xff]
        %v933 = vld [vmem:[#allocation8 + $0x580] sm:$0xff]
        %v934 = vld [vmem:[#allocation8 + $0x588] sm:$0xff]
        %v935 = vld [vmem:[#allocation8 + $0x590] sm:$0xff]
        %v936 = vld [vmem:[#allocation8 + $0x598] sm:$0xff]
        %v937 = vld [vmem:[#allocation8 + $0x5a0] sm:$0xff]
        %v938 = vld [vmem:[#allocation8 + $0x5a8] sm:$0xff]
        %v939 = vld [vmem:[#allocation8 + $0x5b0] sm:$0xff]
        %v940 = vld [vmem:[#allocation8 + $0x5b8] sm:$0xff]
        %v941 = vld [vmem:[#allocation8 + $0x5c0] sm:$0xff]
        %v942 = vld [vmem:[#allocation8 + $0x5c8] sm:$0xff]
        %v943 = vld [vmem:[#allocation8 + $0x5d0] sm:$0xff]
        %v944 = vld [vmem:[#allocation8 + $0x5d8] sm:$0xff]
        %v945 = vld [vmem:[#allocation8 + $0x5e0] sm:$0xff]
        %v946 = vld [vmem:[#allocation8 + $0x5e8] sm:$0xff]
        %v947 = vld [vmem:[#allocation8 + $0x5f0] sm:$0xff]
        %v948 = vld [vmem:[#allocation8 + $0x5f8] sm:$0xff]
        %v949 = vld [vmem:[#allocation8 + $0x600] sm:$0xff]
        %v950 = vld [vmem:[#allocation8 + $0x608] sm:$0xff]
        %v951 = vld [vmem:[#allocation8 + $0x610] sm:$0xff]
        %v952 = vld [vmem:[#allocation8 + $0x618] sm:$0xff]
        %v953 = vld [vmem:[#allocation8 + $0x620] sm:$0xff]
        %v954 = vld [vmem:[#allocation8 + $0x628] sm:$0xff]
        %v955 = vld [vmem:[#allocation8 + $0x630] sm:$0xff]
        %v956 = vld [vmem:[#allocation8 + $0x638] sm:$0xff]
        %v957 = vld [vmem:[#allocation8 + $0x640] sm:$0xff]
        %v958 = vld [vmem:[#allocation8 + $0x648] sm:$0xff]
        %v959 = vld [vmem:[#allocation8 + $0x650] sm:$0xff]
        %v960 = vld [vmem:[#allocation8 + $0x658] sm:$0xff]
        %v961 = vld [vmem:[#allocation8 + $0x660] sm:$0xff]
        %v962 = vld [vmem:[#allocation8 + $0x668] sm:$0xff]
        %v963 = vld [vmem:[#allocation8 + $0x670] sm:$0xff]
        %v964 = vld [vmem:[#allocation8 + $0x678] sm:$0xff]
        %v965 = vld [vmem:[#allocation8 + $0x680] sm:$0xff]
        %v966 = vld [vmem:[#allocation8 + $0x688] sm:$0xff]
        %v967 = vld [vmem:[#allocation8 + $0x690] sm:$0xff]
        %v968 = vld [vmem:[#allocation8 + $0x698] sm:$0xff]
        %v969 = vld [vmem:[#allocation8 + $0x6a0] sm:$0xff]
        %v970 = vld [vmem:[#allocation8 + $0x6a8] sm:$0xff]
        %v971 = vld [vmem:[#allocation8 + $0x6b0] sm:$0xff]
        %v972 = vld [vmem:[#allocation8 + $0x6b8] sm:$0xff]
        %v973 = vld [vmem:[#allocation8 + $0x6c0] sm:$0xff]
        %v974 = vld [vmem:[#allocation8 + $0x6c8] sm:$0xff]
        %v975 = vld [vmem:[#allocation8 + $0x6d0] sm:$0xff]
        %v976 = vld [vmem:[#allocation8 + $0x6d8] sm:$0xff]
        %v977 = vld [vmem:[#allocation8 + $0x6e0] sm:$0xff]
        %v978 = vld [vmem:[#allocation8 + $0x6e8] sm:$0xff]
        %v979 = vld [vmem:[#allocation8 + $0x6f0] sm:$0xff]
        %v980 = vld [vmem:[#allocation8 + $0x6f8] sm:$0xff]
        %v981 = vld [vmem:[#allocation8 + $0x700] sm:$0xff]
        %v982 = vld [vmem:[#allocation8 + $0x708] sm:$0xff]
        %v983 = vld [vmem:[#allocation8 + $0x710] sm:$0xff]
        %v984 = vld [vmem:[#allocation8 + $0x718] sm:$0xff]
        %v985 = vld [vmem:[#allocation8 + $0x720] sm:$0xff]
        %v986 = vld [vmem:[#allocation8 + $0x728] sm:$0xff]
        %v987 = vld [vmem:[#allocation8 + $0x730] sm:$0xff]
        %v988 = vld [vmem:[#allocation8 + $0x738] sm:$0xff]
        %v989 = vld [vmem:[#allocation8 + $0x740] sm:$0xff]
        %v990 = vld [vmem:[#allocation8 + $0x748] sm:$0xff]
        %v991 = vld [vmem:[#allocation8 + $0x750] sm:$0xff]
        %v992 = vld [vmem:[#allocation8 + $0x758] sm:$0xff]
        %v993 = vld [vmem:[#allocation8 + $0x760] sm:$0xff]
        %v994 = vld [vmem:[#allocation8 + $0x768] sm:$0xff]
        %v995 = vld [vmem:[#allocation8 + $0x770] sm:$0xff]
        %v996 = vld [vmem:[#allocation8 + $0x778] sm:$0xff]
        %v997 = vld [vmem:[%s4] sm:$0x7]
        %v999 = vlaneseq
        %v1000 = vshrl.u32 %v999, 7
        %v1001 = vsub.s32 0, %v1000
        %v1002 = vrot.slane %v997, %v1001
        %v1003 = vlaneseq
        %v1004 = vshrl.u32 %v1003, 7
        %v1005 = vsub.s32 1, %v1004
        %v1006 = vrot.slane %v997, %v1005
        %v1007 = vlaneseq
        %v1008 = vshrl.u32 %v1007, 7
        %v1009 = vsub.s32 2, %v1008
        %v1010 = vrot.slane %v997, %v1009
        %1014 = vmatprep.subr.mxu0 %v803
        %1015 = vmatpush1.msra.mxu0 %v802
        %1016 = vmatprep.subr.mxu0 %v800
        %1017 = vmatpush1.msra.mxu0 %v799
        %1018 = vmatprep.subr.mxu0 %v797
        %1019 = vmatpush1.msra.mxu0 %v796
        %1020 = vmatprep.subr.mxu0 %v794
        %1021 = vmatpush1.msra.mxu0 %v793
        %1022 = vmatprep.subr.mxu0 %v791
        %1023 = vmatpush1.msra.mxu0 %v790
        %1024 = vmatprep.subr.mxu0 %v788
        %1025 = vmatpush1.msra.mxu0 %v787
        %1026 = vmatprep.subr.mxu0 %v785
        %1027 = vmatpush1.msra.mxu0 %v784
        %1028 = vmatprep.subr.mxu0 %v782
        %1029 = vmatpush1.msra.mxu0 %v781
        %1030 = vmatprep.subr.mxu0 %v779
        %1031 = vmatpush1.msra.mxu0 %v778
        %1032 = vmatprep.subr.mxu0 %v776
        %1033 = vmatpush1.msra.mxu0 %v775
        %1034 = vmatprep.subr.mxu0 %v773
        %1035 = vmatpush1.msra.mxu0 %v772
        %1036 = vmatprep.subr.mxu0 %v770
        %1037 = vmatpush1.msra.mxu0 %v769
        %1038 = vmatprep.subr.mxu0 %v767
        %1039 = vmatpush1.msra.mxu0 %v766
        %1040 = vmatprep.subr.mxu0 %v764
        %1041 = vmatpush1.msra.mxu0 %v763
        %1042 = vmatprep.subr.mxu0 %v761
        %1043 = vmatpush1.msra.mxu0 %v760
        %1044 = vmatprep.subr.mxu0 %v758
        %1045 = vmatpush1.msra.mxu0 %v757
        %1046 = vmatprep.subr.mxu0 %v851
        %1047 = vmatpush2.msra.mxu0 %v850
        %1048 = vmatprep.subr.mxu0 %v848
        %1049 = vmatpush2.msra.mxu0 %v847
        %1050 = vmatprep.subr.mxu0 %v845
        %1051 = vmatpush2.msra.mxu0 %v844
        %1052 = vmatprep.subr.mxu0 %v842
        %1053 = vmatpush2.msra.mxu0 %v841
        %1054 = vmatprep.subr.mxu0 %v839
        %1055 = vmatpush2.msra.mxu0 %v838
        %1056 = vmatprep.subr.mxu0 %v836
        %1057 = vmatpush2.msra.mxu0 %v835
        %1058 = vmatprep.subr.mxu0 %v833
        %1059 = vmatpush2.msra.mxu0 %v832
        %1060 = vmatprep.subr.mxu0 %v830
        %1061 = vmatpush2.msra.mxu0 %v829
        %1062 = vmatprep.subr.mxu0 %v827
        %1063 = vmatpush2.msra.mxu0 %v826
        %1064 = vmatprep.subr.mxu0 %v824
        %1065 = vmatpush2.msra.mxu0 %v823
        %1066 = vmatprep.subr.mxu0 %v821
        %1067 = vmatpush2.msra.mxu0 %v820
        %1068 = vmatprep.subr.mxu0 %v818
        %1069 = vmatpush2.msra.mxu0 %v817
        %1070 = vmatprep.subr.mxu0 %v815
        %1071 = vmatpush2.msra.mxu0 %v814
        %1072 = vmatprep.subr.mxu0 %v812
        %1073 = vmatpush2.msra.mxu0 %v811
        %1074 = vmatprep.subr.mxu0 %v809
        %1075 = vmatpush2.msra.mxu0 %v808
        %1076 = vmatprep.subr.mxu0 %v806
        %1077 = vmatpush2.msra.mxu0 %v805
        %1078 = vmatprep.mubr.f32.mxu0 %v742
        %1079 = vmatmul.mubr.f32.gmra.mxu0 %v741
        %v1080 = vpop.f32.mrf.mxu0
        %v1081 = vadd.f32 %v1002, %v1080
        %v1082 = vpop.f32.mrf.mxu0
        %v1083 = vadd.f32 %v1006, %v1082
        %1084 = vmatprep.mubr.f32.mxu0 %v746
        %1085 = vmatmul.mubr.f32.gmra.mxu0 %v745
        %v1086 = vpop.f32.mrf.mxu0
        %v1087 = vadd.f32 %v1002, %v1086
        %v1088 = vpop.f32.mrf.mxu0
        %v1089 = vadd.f32 %v1006, %v1088
        %1090 = vmatprep.mubr.f32.mxu0 %v750
        %1091 = vmatmul.mubr.f32.gmra.mxu0 %v749
        %v1092 = vpop.f32.mrf.mxu0
        %v1093 = vadd.f32 %v1002, %v1092
        %v1094 = vpop.f32.mrf.mxu0
        %v1095 = vadd.f32 %v1006, %v1094
        %1096 = vmatprep.mubr.f32.mxu0 %v754
        %1097 = vmatmul.mubr.f32.gmra.mxu0 %v753
        %v1098 = vpop.f32.mrf.mxu0
        %v1099 = vadd.f32 %v1002, %v1098
        %v1100 = vpop.f32.mrf.mxu0
        %v1101 = vadd.f32 %v1006, %v1100
        %1102 = vdwg.mxu0
        %1103 = vmatprep.subr.mxu0 %v899
        %1104 = vmatpush1.msra.mxu0 %v898
        %1105 = vmatprep.subr.mxu0 %v896
        %1106 = vmatpush1.msra.mxu0 %v895
        %1107 = vmatprep.subr.mxu0 %v893
        %1108 = vmatpush1.msra.mxu0 %v892
        %1109 = vmatprep.subr.mxu0 %v890
        %1110 = vmatpush1.msra.mxu0 %v889
        %1111 = vmatprep.subr.mxu0 %v887
        %1112 = vmatpush1.msra.mxu0 %v886
        %1113 = vmatprep.subr.mxu0 %v884
        %1114 = vmatpush1.msra.mxu0 %v883
        %1115 = vmatprep.subr.mxu0 %v881
        %1116 = vmatpush1.msra.mxu0 %v880
        %1117 = vmatprep.subr.mxu0 %v878
        %1118 = vmatpush1.msra.mxu0 %v877
        %1119 = vmatprep.subr.mxu0 %v875
        %1120 = vmatpush1.msra.mxu0 %v874
        %1121 = vmatprep.subr.mxu0 %v872
        %1122 = vmatpush1.msra.mxu0 %v871
        %1123 = vmatprep.subr.mxu0 %v869
        %1124 = vmatpush1.msra.mxu0 %v868
        %1125 = vmatprep.subr.mxu0 %v866
        %1126 = vmatpush1.msra.mxu0 %v865
        %1127 = vmatprep.subr.mxu0 %v863
        %1128 = vmatpush1.msra.mxu0 %v862
        %1129 = vmatprep.subr.mxu0 %v860
        %1130 = vmatpush1.msra.mxu0 %v859
        %1131 = vmatprep.subr.mxu0 %v857
        %1132 = vmatpush1.msra.mxu0 %v856
        %1133 = vmatprep.subr.mxu0 %v854
        %1134 = vmatpush1.msra.mxu0 %v853
        %1135 = vmatprep.subr.mxu0 %v947
        %1136 = vmatpush2.msra.mxu0 %v946
        %1137 = vmatprep.subr.mxu0 %v944
        %1138 = vmatpush2.msra.mxu0 %v943
        %1139 = vmatprep.subr.mxu0 %v941
        %1140 = vmatpush2.msra.mxu0 %v940
        %1141 = vmatprep.subr.mxu0 %v938
        %1142 = vmatpush2.msra.mxu0 %v937
        %1143 = vmatprep.subr.mxu0 %v935
        %1144 = vmatpush2.msra.mxu0 %v934
        %1145 = vmatprep.subr.mxu0 %v932
        %1146 = vmatpush2.msra.mxu0 %v931
        %1147 = vmatprep.subr.mxu0 %v929
        %1148 = vmatpush2.msra.mxu0 %v928
        %1149 = vmatprep.subr.mxu0 %v926
        %1150 = vmatpush2.msra.mxu0 %v925
        %1151 = vmatprep.subr.mxu0 %v923
        %1152 = vmatpush2.msra.mxu0 %v922
        %1153 = vmatprep.subr.mxu0 %v920
        %1154 = vmatpush2.msra.mxu0 %v919
        %1155 = vmatprep.subr.mxu0 %v917
        %1156 = vmatpush2.msra.mxu0 %v916
        %1157 = vmatprep.subr.mxu0 %v914
        %1158 = vmatpush2.msra.mxu0 %v913
        %1159 = vmatprep.subr.mxu0 %v911
        %1160 = vmatpush2.msra.mxu0 %v910
        %1161 = vmatprep.subr.mxu0 %v908
        %1162 = vmatpush2.msra.mxu0 %v907
        %1163 = vmatprep.subr.mxu0 %v905
        %1164 = vmatpush2.msra.mxu0 %v904
        %1165 = vmatprep.subr.mxu0 %v902
        %1166 = vmatpush2.msra.mxu0 %v901
        %1167 = vmatprep.mubr.f32.mxu0 %v744
        %1168 = vmatmul.mubr.f32.gmra.mxu0 %v743
        %v1169 = vpop.f32.mrf.mxu0
        %v1170 = vadd.f32 %v1081, %v1169
        %v1171 = vpop.f32.mrf.mxu0
        %v1172 = vadd.f32 %v1083, %v1171
        %1173 = vmatprep.mubr.f32.mxu0 %v748
        %1174 = vmatmul.mubr.f32.gmra.mxu0 %v747
        %v1175 = vpop.f32.mrf.mxu0
        %v1176 = vadd.f32 %v1087, %v1175
        %v1177 = vpop.f32.mrf.mxu0
        %v1178 = vadd.f32 %v1089, %v1177
        %1179 = vmatprep.mubr.f32.mxu0 %v752
        %1180 = vmatmul.mubr.f32.gmra.mxu0 %v751
        %v1181 = vpop.f32.mrf.mxu0
        %v1182 = vadd.f32 %v1093, %v1181
        %v1183 = vpop.f32.mrf.mxu0
        %v1184 = vadd.f32 %v1095, %v1183
        %1185 = vmatprep.mubr.f32.mxu0 %v756
        %1186 = vmatmul.mubr.f32.gmra.mxu0 %v755
        %v1187 = vpop.f32.mrf.mxu0
        %v1188 = vadd.f32 %v1099, %v1187
        %v1189 = vpop.f32.mrf.mxu0
        %v1190 = vadd.f32 %v1101, %v1189
        %1191 = vdwg.mxu0
        %1192 = vmatprep.subr.mxu0 %v995
        %1193 = vmatpush1.msra.mxu0 %v994
        %1194 = vmatprep.subr.mxu0 %v992
        %1195 = vmatpush1.msra.mxu0 %v991
        %1196 = vmatprep.subr.mxu0 %v989
        %1197 = vmatpush1.msra.mxu0 %v988
        %1198 = vmatprep.subr.mxu0 %v986
        %1199 = vmatpush1.msra.mxu0 %v985
        %1200 = vmatprep.subr.mxu0 %v983
        %1201 = vmatpush1.msra.mxu0 %v982
        %1202 = vmatprep.subr.mxu0 %v980
        %1203 = vmatpush1.msra.mxu0 %v979
        %1204 = vmatprep.subr.mxu0 %v977
        %1205 = vmatpush1.msra.mxu0 %v976
        %1206 = vmatprep.subr.mxu0 %v974
        %1207 = vmatpush1.msra.mxu0 %v973
        %1208 = vmatprep.subr.mxu0 %v971
        %1209 = vmatpush1.msra.mxu0 %v970
        %1210 = vmatprep.subr.mxu0 %v968
        %1211 = vmatpush1.msra.mxu0 %v967
        %1212 = vmatprep.subr.mxu0 %v965
        %1213 = vmatpush1.msra.mxu0 %v964
        %1214 = vmatprep.subr.mxu0 %v962
        %1215 = vmatpush1.msra.mxu0 %v961
        %1216 = vmatprep.subr.mxu0 %v959
        %1217 = vmatpush1.msra.mxu0 %v958
        %1218 = vmatprep.subr.mxu0 %v956
        %1219 = vmatpush1.msra.mxu0 %v955
        %1220 = vmatprep.subr.mxu0 %v953
        %1221 = vmatpush1.msra.mxu0 %v952
        %1222 = vmatprep.subr.mxu0 %v950
        %1223 = vmatpush1.msra.mxu0 %v949
        %1224 = vmatprep.subr.mxu0 0.0
        %1225 = vmatpush2.msra.mxu0 0.0
        %1226 = vmatprep.subr.mxu0 0.0
        %1227 = vmatpush2.msra.mxu0 0.0
        %1228 = vmatprep.subr.mxu0 0.0
        %1229 = vmatpush2.msra.mxu0 0.0
        %1230 = vmatprep.subr.mxu0 0.0
        %1231 = vmatpush2.msra.mxu0 0.0
        %1232 = vmatprep.subr.mxu0 0.0
        %1233 = vmatpush2.msra.mxu0 0.0
        %1234 = vmatprep.subr.mxu0 0.0
        %1235 = vmatpush2.msra.mxu0 0.0
        %1236 = vmatprep.subr.mxu0 0.0
        %1237 = vmatpush2.msra.mxu0 0.0
        %1238 = vmatprep.subr.mxu0 0.0
        %1239 = vmatpush2.msra.mxu0 0.0
        %1240 = vmatprep.subr.mxu0 0.0
        %1241 = vmatpush2.msra.mxu0 0.0
        %1242 = vmatprep.subr.mxu0 0.0
        %1243 = vmatpush2.msra.mxu0 0.0
        %1244 = vmatprep.subr.mxu0 0.0
        %1245 = vmatpush2.msra.mxu0 0.0
        %1246 = vmatprep.subr.mxu0 0.0
        %1247 = vmatpush2.msra.mxu0 0.0
        %1248 = vmatprep.subr.mxu0 0.0
        %1249 = vmatpush2.msra.mxu0 0.0
        %1250 = vmatprep.subr.mxu0 0.0
        %1251 = vmatpush2.msra.mxu0 0.0
        %1252 = vmatprep.subr.mxu0 0.0
        %1253 = vmatpush2.msra.mxu0 0.0
        %1254 = vmatprep.subr.mxu0 0.0
        %1255 = vmatpush2.msra.mxu0 0.0
        %1256 = vmatprep.mubr.f32.mxu0 0.0
        %1257 = vmatmul.mubr.f32.gmra.mxu0 %v643
        %v1258 = vpop.f32.mrf.mxu0
        %v1259 = vadd.f32 %v1170, %v1258
        %v1260 = vpop.f32.mrf.mxu0
        %v1261 = vadd.f32 %v1172, %v1260
        %1262 = vmatprep.mubr.f32.mxu0 0.0
        %1263 = vmatmul.mubr.f32.gmra.mxu0 %v648
        %v1264 = vpop.f32.mrf.mxu0
        %v1265 = vadd.f32 %v1176, %v1264
        %v1266 = vpop.f32.mrf.mxu0
        %v1267 = vadd.f32 %v1178, %v1266
        %1268 = vmatprep.mubr.f32.mxu0 0.0
        %1269 = vmatmul.mubr.f32.gmra.mxu0 %v653
        %v1270 = vpop.f32.mrf.mxu0
        %v1271 = vadd.f32 %v1182, %v1270
        %v1272 = vpop.f32.mrf.mxu0
        %v1273 = vadd.f32 %v1184, %v1272
        %1274 = vmatprep.mubr.f32.mxu0 0.0
        %1275 = vmatmul.mubr.f32.gmra.mxu0 %v658
        %v1276 = vpop.f32.mrf.mxu0
        %v1277 = vadd.f32 %v1188, %v1276
        %v1278 = vpop.f32.mrf.mxu0
        %v1279 = vadd.f32 %v1190, %v1278
        %1280 = vdwg.mxu0
        %1281 = vmatprep.subr.mxu0 0.0
        %1282 = vmatpush1.msra.mxu0 %v804
        %1283 = vmatprep.subr.mxu0 0.0
        %1284 = vmatpush1.msra.mxu0 %v801
        %1285 = vmatprep.subr.mxu0 0.0
        %1286 = vmatpush1.msra.mxu0 %v798
        %1287 = vmatprep.subr.mxu0 0.0
        %1288 = vmatpush1.msra.mxu0 %v795
        %1289 = vmatprep.subr.mxu0 0.0
        %1290 = vmatpush1.msra.mxu0 %v792
        %1291 = vmatprep.subr.mxu0 0.0
        %1292 = vmatpush1.msra.mxu0 %v789
        %1293 = vmatprep.subr.mxu0 0.0
        %1294 = vmatpush1.msra.mxu0 %v786
        %1295 = vmatprep.subr.mxu0 0.0
        %1296 = vmatpush1.msra.mxu0 %v783
        %1297 = vmatprep.subr.mxu0 0.0
        %1298 = vmatpush1.msra.mxu0 %v780
        %1299 = vmatprep.subr.mxu0 0.0
        %1300 = vmatpush1.msra.mxu0 %v777
        %1301 = vmatprep.subr.mxu0 0.0
        %1302 = vmatpush1.msra.mxu0 %v774
        %1303 = vmatprep.subr.mxu0 0.0
        %1304 = vmatpush1.msra.mxu0 %v771
        %1305 = vmatprep.subr.mxu0 0.0
        %1306 = vmatpush1.msra.mxu0 %v768
        %1307 = vmatprep.subr.mxu0 0.0
        %1308 = vmatpush1.msra.mxu0 %v765
        %1309 = vmatprep.subr.mxu0 0.0
        %1310 = vmatpush1.msra.mxu0 %v762
        %1311 = vmatprep.subr.mxu0 0.0
        %1312 = vmatpush1.msra.mxu0 %v759
        %1313 = vmatprep.subr.mxu0 0.0
        %1314 = vmatpush2.msra.mxu0 %v852
        %1315 = vmatprep.subr.mxu0 0.0
        %1316 = vmatpush2.msra.mxu0 %v849
        %1317 = vmatprep.subr.mxu0 0.0
        %1318 = vmatpush2.msra.mxu0 %v846
        %1319 = vmatprep.subr.mxu0 0.0
        %1320 = vmatpush2.msra.mxu0 %v843
        %1321 = vmatprep.subr.mxu0 0.0
        %1322 = vmatpush2.msra.mxu0 %v840
        %1323 = vmatprep.subr.mxu0 0.0
        %1324 = vmatpush2.msra.mxu0 %v837
        %1325 = vmatprep.subr.mxu0 0.0
        %1326 = vmatpush2.msra.mxu0 %v834
        %1327 = vmatprep.subr.mxu0 0.0
        %1328 = vmatpush2.msra.mxu0 %v831
        %1329 = vmatprep.subr.mxu0 0.0
        %1330 = vmatpush2.msra.mxu0 %v828
        %1331 = vmatprep.subr.mxu0 0.0
        %1332 = vmatpush2.msra.mxu0 %v825
        %1333 = vmatprep.subr.mxu0 0.0
        %1334 = vmatpush2.msra.mxu0 %v822
        %1335 = vmatprep.subr.mxu0 0.0
        %1336 = vmatpush2.msra.mxu0 %v819
        %1337 = vmatprep.subr.mxu0 0.0
        %1338 = vmatpush2.msra.mxu0 %v816
        %1339 = vmatprep.subr.mxu0 0.0
        %1340 = vmatpush2.msra.mxu0 %v813
        %1341 = vmatprep.subr.mxu0 0.0
        %1342 = vmatpush2.msra.mxu0 %v810
        %1343 = vmatprep.subr.mxu0 0.0
        %1344 = vmatpush2.msra.mxu0 %v807
        %1345 = vmatprep.mubr.f32.mxu0 %v742
        %1346 = vmatmul.mubr.f32.gmra.mxu0 %v741
        %v1347 = vpop.f32.mrf.mxu0
        %v1348 = vadd.f32 %v1010, %v1347
        %v1349 = vpop.f32.mrf.mxu0
        %1350 = vmatprep.mubr.f32.mxu0 %v746
        %1351 = vmatmul.mubr.f32.gmra.mxu0 %v745
        %v1352 = vpop.f32.mrf.mxu0
        %v1353 = vadd.f32 %v1010, %v1352
        %v1354 = vpop.f32.mrf.mxu0
        %1355 = vmatprep.mubr.f32.mxu0 %v750
        %1356 = vmatmul.mubr.f32.gmra.mxu0 %v749
        %v1357 = vpop.f32.mrf.mxu0
        %v1358 = vadd.f32 %v1010, %v1357
        %v1359 = vpop.f32.mrf.mxu0
        %1360 = vmatprep.mubr.f32.mxu0 %v754
        %1361 = vmatmul.mubr.f32.gmra.mxu0 %v753
        %v1362 = vpop.f32.mrf.mxu0
        %v1363 = vadd.f32 %v1010, %v1362
        %v1364 = vpop.f32.mrf.mxu0
        %1365 = vdwg.mxu0
        %1366 = vmatprep.subr.mxu0 0.0
        %1367 = vmatpush1.msra.mxu0 %v900
        %1368 = vmatprep.subr.mxu0 0.0
        %1369 = vmatpush1.msra.mxu0 %v897
        %1370 = vmatprep.subr.mxu0 0.0
        %1371 = vmatpush1.msra.mxu0 %v894
        %1372 = vmatprep.subr.mxu0 0.0
        %1373 = vmatpush1.msra.mxu0 %v891
        %1374 = vmatprep.subr.mxu0 0.0
        %1375 = vmatpush1.msra.mxu0 %v888
        %1376 = vmatprep.subr.mxu0 0.0
        %1377 = vmatpush1.msra.mxu0 %v885
        %1378 = vmatprep.subr.mxu0 0.0
        %1379 = vmatpush1.msra.mxu0 %v882
        %1380 = vmatprep.subr.mxu0 0.0
        %1381 = vmatpush1.msra.mxu0 %v879
        %1382 = vmatprep.subr.mxu0 0.0
        %1383 = vmatpush1.msra.mxu0 %v876
        %1384 = vmatprep.subr.mxu0 0.0
        %1385 = vmatpush1.msra.mxu0 %v873
        %1386 = vmatprep.subr.mxu0 0.0
        %1387 = vmatpush1.msra.mxu0 %v870
        %1388 = vmatprep.subr.mxu0 0.0
        %1389 = vmatpush1.msra.mxu0 %v867
        %1390 = vmatprep.subr.mxu0 0.0
        %1391 = vmatpush1.msra.mxu0 %v864
        %1392 = vmatprep.subr.mxu0 0.0
        %1393 = vmatpush1.msra.mxu0 %v861
        %1394 = vmatprep.subr.mxu0 0.0
        %1395 = vmatpush1.msra.mxu0 %v858
        %1396 = vmatprep.subr.mxu0 0.0
        %1397 = vmatpush1.msra.mxu0 %v855
        %1398 = vmatprep.subr.mxu0 0.0
        %1399 = vmatpush2.msra.mxu0 %v948
        %1400 = vmatprep.subr.mxu0 0.0
        %1401 = vmatpush2.msra.mxu0 %v945
        %1402 = vmatprep.subr.mxu0 0.0
        %1403 = vmatpush2.msra.mxu0 %v942
        %1404 = vmatprep.subr.mxu0 0.0
        %1405 = vmatpush2.msra.mxu0 %v939
        %1406 = vmatprep.subr.mxu0 0.0
        %1407 = vmatpush2.msra.mxu0 %v936
        %1408 = vmatprep.subr.mxu0 0.0
        %1409 = vmatpush2.msra.mxu0 %v933
        %1410 = vmatprep.subr.mxu0 0.0
        %1411 = vmatpush2.msra.mxu0 %v930
        %1412 = vmatprep.subr.mxu0 0.0
        %1413 = vmatpush2.msra.mxu0 %v927
        %1414 = vmatprep.subr.mxu0 0.0
        %1415 = vmatpush2.msra.mxu0 %v924
        %1416 = vmatprep.subr.mxu0 0.0
        %1417 = vmatpush2.msra.mxu0 %v921
        %1418 = vmatprep.subr.mxu0 0.0
        %1419 = vmatpush2.msra.mxu0 %v918
        %1420 = vmatprep.subr.mxu0 0.0
        %1421 = vmatpush2.msra.mxu0 %v915
        %1422 = vmatprep.subr.mxu0 0.0
        %1423 = vmatpush2.msra.mxu0 %v912
        %1424 = vmatprep.subr.mxu0 0.0
        %1425 = vmatpush2.msra.mxu0 %v909
        %1426 = vmatprep.subr.mxu0 0.0
        %1427 = vmatpush2.msra.mxu0 %v906
        %1428 = vmatprep.subr.mxu0 0.0
        %1429 = vmatpush2.msra.mxu0 %v903
        %1430 = vmatprep.mubr.f32.mxu0 %v744
        %1431 = vmatmul.mubr.f32.gmra.mxu0 %v743
        %v1432 = vpop.f32.mrf.mxu0
        %v1433 = vadd.f32 %v1348, %v1432
        %v1434 = vpop.f32.mrf.mxu0
        %1435 = vmatprep.mubr.f32.mxu0 %v748
        %1436 = vmatmul.mubr.f32.gmra.mxu0 %v747
        %v1437 = vpop.f32.mrf.mxu0
        %v1438 = vadd.f32 %v1353, %v1437
        %v1439 = vpop.f32.mrf.mxu0
        %1440 = vmatprep.mubr.f32.mxu0 %v752
        %1441 = vmatmul.mubr.f32.gmra.mxu0 %v751
        %v1442 = vpop.f32.mrf.mxu0
        %v1443 = vadd.f32 %v1358, %v1442
        %v1444 = vpop.f32.mrf.mxu0
        %1445 = vmatprep.mubr.f32.mxu0 %v756
        %1446 = vmatmul.mubr.f32.gmra.mxu0 %v755
        %v1447 = vpop.f32.mrf.mxu0
        %v1448 = vadd.f32 %v1363, %v1447
        %v1449 = vpop.f32.mrf.mxu0
        %1450 = vdwg.mxu0
        %1451 = vmatprep.subr.mxu0 0.0
        %1452 = vmatpush1.msra.mxu0 %v996
        %1453 = vmatprep.subr.mxu0 0.0
        %1454 = vmatpush1.msra.mxu0 %v993
        %1455 = vmatprep.subr.mxu0 0.0
        %1456 = vmatpush1.msra.mxu0 %v990
        %1457 = vmatprep.subr.mxu0 0.0
        %1458 = vmatpush1.msra.mxu0 %v987
        %1459 = vmatprep.subr.mxu0 0.0
        %1460 = vmatpush1.msra.mxu0 %v984
        %1461 = vmatprep.subr.mxu0 0.0
        %1462 = vmatpush1.msra.mxu0 %v981
        %1463 = vmatprep.subr.mxu0 0.0
        %1464 = vmatpush1.msra.mxu0 %v978
        %1465 = vmatprep.subr.mxu0 0.0
        %1466 = vmatpush1.msra.mxu0 %v975
        %1467 = vmatprep.subr.mxu0 0.0
        %1468 = vmatpush1.msra.mxu0 %v972
        %1469 = vmatprep.subr.mxu0 0.0
        %1470 = vmatpush1.msra.mxu0 %v969
        %1471 = vmatprep.subr.mxu0 0.0
        %1472 = vmatpush1.msra.mxu0 %v966
        %1473 = vmatprep.subr.mxu0 0.0
        %1474 = vmatpush1.msra.mxu0 %v963
        %1475 = vmatprep.subr.mxu0 0.0
        %1476 = vmatpush1.msra.mxu0 %v960
        %1477 = vmatprep.subr.mxu0 0.0
        %1478 = vmatpush1.msra.mxu0 %v957
        %1479 = vmatprep.subr.mxu0 0.0
        %1480 = vmatpush1.msra.mxu0 %v954
        %1481 = vmatprep.subr.mxu0 0.0
        %1482 = vmatpush1.msra.mxu0 %v951
        %1483 = vmatprep.subr.mxu0 0.0
        %1484 = vmatpush2.msra.mxu0 0.0
        %1485 = vmatprep.subr.mxu0 0.0
        %1486 = vmatpush2.msra.mxu0 0.0
        %1487 = vmatprep.subr.mxu0 0.0
        %1488 = vmatpush2.msra.mxu0 0.0
        %1489 = vmatprep.subr.mxu0 0.0
        %1490 = vmatpush2.msra.mxu0 0.0
        %1491 = vmatprep.subr.mxu0 0.0
        %1492 = vmatpush2.msra.mxu0 0.0
        %1493 = vmatprep.subr.mxu0 0.0
        %1494 = vmatpush2.msra.mxu0 0.0
        %1495 = vmatprep.subr.mxu0 0.0
        %1496 = vmatpush2.msra.mxu0 0.0
        %1497 = vmatprep.subr.mxu0 0.0
        %1498 = vmatpush2.msra.mxu0 0.0
        %1499 = vmatprep.subr.mxu0 0.0
        %1500 = vmatpush2.msra.mxu0 0.0
        %1501 = vmatprep.subr.mxu0 0.0
        %1502 = vmatpush2.msra.mxu0 0.0
        %1503 = vmatprep.subr.mxu0 0.0
        %1504 = vmatpush2.msra.mxu0 0.0
        %1505 = vmatprep.subr.mxu0 0.0
        %1506 = vmatpush2.msra.mxu0 0.0
        %1507 = vmatprep.subr.mxu0 0.0
        %1508 = vmatpush2.msra.mxu0 0.0
        %1509 = vmatprep.subr.mxu0 0.0
        %1510 = vmatpush2.msra.mxu0 0.0
        %1511 = vmatprep.subr.mxu0 0.0
        %1512 = vmatpush2.msra.mxu0 0.0
        %1513 = vmatprep.subr.mxu0 0.0
        %1514 = vmatpush2.msra.mxu0 0.0
        %1515 = vmatprep.mubr.f32.mxu0 0.0
        %1516 = vmatmul.mubr.f32.gmra.mxu0 %v643
        %v1517 = vpop.f32.mrf.mxu0
        %v1518 = vadd.f32 %v1433, %v1517
        %v1519 = vpop.f32.mrf.mxu0
        %1520 = vmatprep.mubr.f32.mxu0 0.0
        %1521 = vmatmul.mubr.f32.gmra.mxu0 %v648
        %v1522 = vpop.f32.mrf.mxu0
        %v1523 = vadd.f32 %v1438, %v1522
        %v1524 = vpop.f32.mrf.mxu0
        %1525 = vmatprep.mubr.f32.mxu0 0.0
        %1526 = vmatmul.mubr.f32.gmra.mxu0 %v653
        %v1527 = vpop.f32.mrf.mxu0
        %v1528 = vadd.f32 %v1443, %v1527
        %v1529 = vpop.f32.mrf.mxu0
        %1530 = vmatprep.mubr.f32.mxu0 0.0
        %1531 = vmatmul.mubr.f32.gmra.mxu0 %v658
        %v1532 = vpop.f32.mrf.mxu0
        %v1533 = vadd.f32 %v1448, %v1532
        %v1534 = vpop.f32.mrf.mxu0
        %1535 = vdwg.mxu0
        %v1536 = vxor.u32 %v1259, 2147483648
        %v1537 = vxor.u32 %v1265, 2147483648
        %v1538 = vxor.u32 %v1271, 2147483648
        %v1539 = vxor.u32 %v1277, 2147483648
        %v1540 = vmul.f32 %v1536, 1.442695
        %v1541 = vpow.pop %v1540
        %v1542 = vmul.f32 %v1537, 1.442695
        %v1543 = vpow.pop %v1542
        %v1544 = vmul.f32 %v1538, 1.442695
        %v1545 = vpow.pop %v1544
        %v1546 = vmul.f32 %v1539, 1.442695
        %v1547 = vpow.pop %v1546
        %v1548 = vadd.f32 %v1541, 1.0
        %v1549 = vadd.f32 %v1543, 1.0
        %v1550 = vadd.f32 %v1545, 1.0
        %v1551 = vadd.f32 %v1547, 1.0
        %v1552 = vrcp.pop %v1548
        %v1553 = vmul.f32 1.0, %v1552
        %v1554 = vrcp.pop %v1549
        %v1555 = vmul.f32 1.0, %v1554
        %v1556 = vrcp.pop %v1550
        %v1557 = vmul.f32 1.0, %v1556
        %v1558 = vrcp.pop %v1551
        %v1559 = vmul.f32 1.0, %v1558
        %v1560 = vmin.f32 %v1261, 0.0
        %v1561 = vmin.f32 %v1267, 0.0
        %v1562 = vmin.f32 %v1273, 0.0
        %v1563 = vmin.f32 %v1279, 0.0
        %v1564 = vmul.f32 %v1560, 1.442695
        %v1565 = vpow.pop %v1564
        %v1566 = vmul.f32 %v1561, 1.442695
        %v1567 = vpow.pop %v1566
        %v1568 = vmul.f32 %v1562, 1.442695
        %v1569 = vpow.pop %v1568
        %v1570 = vmul.f32 %v1563, 1.442695
        %v1571 = vpow.pop %v1570
        %v1572 = vsub.f32 %v1565, 1.0
        %v1573 = vsub.f32 %v1567, 1.0
        %v1574 = vsub.f32 %v1569, 1.0
        %v1575 = vsub.f32 %v1571, 1.0
        %vm1576 = vcmp.gt.f32.partialorder %v1261, 0.0
        %vm1577 = vcmp.gt.f32.partialorder %v1267, 0.0
        %vm1578 = vcmp.gt.f32.partialorder %v1273, 0.0
        %vm1579 = vcmp.gt.f32.partialorder %v1279, 0.0
        %v1580 = vsel %vm1576, %v1261, %v1572
        %v1581 = vsel %vm1577, %v1267, %v1573
        %v1582 = vsel %vm1578, %v1273, %v1574
        %v1583 = vsel %vm1579, %v1279, %v1575
        %v1584 = vsub.f32 1.0, %v1553
        %v1585 = vsub.f32 1.0, %v1555
        %v1586 = vsub.f32 1.0, %v1557
        %v1587 = vsub.f32 1.0, %v1559
        %v1588 = vmul.f32 %v1584, %v1518
        %v1589 = vmul.f32 %v1585, %v1523
        %v1590 = vmul.f32 %v1586, %v1528
        %v1591 = vmul.f32 %v1587, %v1533
        %v1592 = vmul.f32 %v1553, %v1580
        %v1593 = vmul.f32 %v1555, %v1581
        %v1594 = vmul.f32 %v1557, %v1582
        %v1595 = vmul.f32 %v1559, %v1583
        %v1596 = vadd.f32 %v1588, %v1592
        %v1597 = vadd.f32 %v1589, %v1593
        %v1598 = vadd.f32 %v1590, %v1594
        %v1599 = vadd.f32 %v1591, %v1595
        %v1600 = vadd.f32 %v1596, %v643
        %v1601 = vadd.f32 %v1597, %v648
        %v1602 = vadd.f32 %v1598, %v653
        %v1603 = vadd.f32 %v1599, %v658
        %1604 = vst [vmem:[%s284] sm:$0xff] %v1600
        %1605 = vst [vmem:[%s284 + $0x8] sm:$0xff] %v1601
        %1606 = vst [vmem:[%s284 + $0x10] sm:$0xff] %v1602
        %1607 = vst [vmem:[%s284 + $0x18] sm:$0xff] %v1603
        %s1608 = sand.u32 %s142, 1
        %s1609 = scalar_lea.sflag [#allocation4], %s1608
        %s1610 = sand.u32 %s142, 1
        %s1611 = smul.addr %s1610, 32
        %s1612 = scalar_lea.vmem [#allocation10], %s1611
        // Predicated region
        $region57: #{tpu_custom_call.1} parent=39 // pred_check
          %p1613 = pneg %p152
        $region58: #{tpu_custom_call.1} parent=39 // pred_check_branch
          %1615 = sbr.rel (%p1613) target = $region60
        $region59: #{tpu_custom_call.1} parent=39 // pred_region
          %s1616 = smul.u32 4, %s24
          %s1618 = ssub.s32 512, 512
          %1619 = vsyncadd %s1609, %s1618
          %s1620 = smul.addr %s1616, 128
          %s1621 = scalar_lea.hbm %s5, %s1620
          %s1622 = sshll.u32 %s1612, 4
          %s1623 = int_to_ptr.vmem [resolvable:$true] %s1622
          %1628 = dma.vmem_to_hbm [thread:$0]  %s1623, 512, %s1621, %s1609, 128, 128, 8
        $region60: #{tpu_custom_call.1} parent=39 // pred_fallthru
          _
      $region40: #{tpu_custom_call.1} parent=5 // pred_fallthru
        _
      %p1629 = scmp.le.s32.totalorder 2, %s19
      // Predicated region
      $region61: #{tpu_custom_call.1} parent=5 // pred_check
        %p1630 = pneg %p1629
      $region62: #{tpu_custom_call.1} parent=5 // pred_check_branch
        %1632 = sbr.rel (%p1630) target = $region64
      $region63: #{tpu_custom_call.1} parent=5 // pred_region
        %s1633 = ssub.s32 %s19, 2
        // Predicated region
        $region65: #{tpu_custom_call.1} parent=63 // pred_check
          %p1634 = pneg %p158
        $region66: #{tpu_custom_call.1} parent=63 // pred_check_branch
          %1636 = sbr.rel (%p1634) target = $region68
        $region67: #{tpu_custom_call.1} parent=63 // pred_region
          %s1637 = sand.u32 %s143, 1
          %s1638 = scalar_lea.sflag [#allocation4], %s1637
          %s1639 = sand.u32 %s143, 1
          %s1640 = smul.addr %s1639, 32
          %s1641 = scalar_lea.vmem [#allocation10], %s1640
          %1642 = dma.done %s1638, 512
        $region68: #{tpu_custom_call.1} parent=63 // pred_fallthru
          _
      $region64: #{tpu_custom_call.1} parent=5 // pred_fallthru
        _
    $region6: #{tpu_custom_call.1} parent=1 // loop_footer
      %s23 = sadd.s32 1, %s19
    $region7: #{tpu_custom_call.1} parent=1 // loop_footer_branch
      %18 = sbr.rel target = $region3
    $region8: #{tpu_custom_call.1} parent=1 // loop_exit
      _
    %1643 = vsyncpa [#allocation3], 1
    %s1644 = scalar_lea.sflag [#allocation3], 1
    %1645 = vsyncpa %s1644, 1
    %1646 = vsyncpa [#allocation6], 1
    %1647 = vsyncpa [#allocation9], 1
    %1648 = vsyncpa [#allocation4], 1
    %s1649 = scalar_lea.sflag [#allocation4], 1
    %1650 = vsyncpa %s1649, 1

</llo_original>
